<compile_context>
chip_gen: v7x
topology: tpu7x:2x2x1
jax: 0.10.0
libtpu: 0.0.40
codegen_flags: <defaults>
</compile_context>

<pallas_src>
import jax
import jax.numpy as jnp
from jax import lax
from jax.experimental import pallas as pl
from jax.experimental.pallas import tpu as pltpu


def _conv3x3_tanh_kernel(x_ref, w_ref, b_ref, o_ref, acc_ref):
    """One (batch, cout-tile, row-tile) grid step.

    x_ref:   (1, h_pad+2, wp, 3*Cin) bf16  W-im2col'd, zero-padded input slab
    w_ref:   (3, 3*Cin, ct)          bf16  per-dy stacked weight tile
    b_ref:   (1, ct)                 f32   bias tile
    o_ref:   (1, th, wp, ct)               output row tile (lane/sublane dense)
    acc_ref: (th*wp, ct)             f32   VMEM accumulator scratch
    """
    th = o_ref.shape[1]
    wp = o_ref.shape[2]
    ct = o_ref.shape[3]
    kc = x_ref.shape[3]

    rt = pl.program_id(2)                      # row-tile axis is grid axis 2
    row0 = pl.multiple_of(rt * th, th)         # start row of this tile in slab

    # 3x3 conv = 3 large-K MXU matmuls (one per dy); the dx taps are folded
    # into K = 3*Cin by the wrapper-side im2col.  Keep the += chain intact so
    # the compiler can accumulate in the MXU result buffer (MRB on v7x).
    for dy in range(3):
        band = x_ref[0, pl.ds(row0 + dy, th), :, :]      # (th, wp, 3Cin) outer-dim slice
        band2d = band.reshape(th * wp, kc)               # wp % 8 == 0 -> tile-aligned
        part = jnp.dot(band2d, w_ref[dy],
                       preferred_element_type=jnp.float32)
        if dy == 0:
            acc_ref[...] = part
        else:
            acc_ref[...] += part

    y = jnp.tanh(acc_ref[...] + b_ref[...])              # f32 EUP tanh, bias bcast
    o_ref[...] = y.reshape(th, wp, ct)[None, :, :, :].astype(o_ref.dtype)


def _cout_tile(cout: int) -> int:
    """Lane-tile width for Cout: 256 fills the 256-wide MXU on v6e/v7x."""
    if cout % 256 == 0:
        try:
            kind = jax.devices()[0].device_kind.lower()
        except Exception:
            kind = ""
        if ("v6" in kind) or ("v7" in kind) or ("7x" in kind):
            return 256
    if cout % 128 == 0:
        return 128
    return cout   # non-multiple-of-128 fallback: single (lane-masked) tile


@jax.jit
def conv3x3_tanh(x_nchw, w_oihw, bias):
    """tanh(conv2d(x, w, b, stride=1, padding=1)) with NCHW public interface."""
    N, Cin, H, W = x_nchw.shape
    Cout = w_oihw.shape[0]

    # Cout tiling (MXU-width aware).
    ct = _cout_tile(Cout)
    n_co = Cout // ct

    # Width padded to a sublane multiple so in-kernel reshapes and the output
    # store are tile-aligned / unmasked.
    wp = ((W + 7) // 8) * 8
    # Row tile: target matmul M = th*wp ~ 512 to amortize per-step overhead and
    # keep the MXU fed; cover the whole image when it is small.
    th = max(1, min(-(-512 // wp), H))
    h_pad = ((H + th - 1) // th) * th
    n_rt = h_pad // th
    hs = h_pad + 2
    kc = 3 * Cin

    # bf16 operands into the MXU, f32 accumulation inside the kernel.
    # TODO(synk): optional fp8 weights on v7x (2x MXU throughput) gated on an
    # accuracy budget; not enabled here to keep parity tolerances tight.
    xb = x_nchw.astype(jnp.bfloat16)
    wb = w_oihw.astype(jnp.bfloat16)

    # Layout plumbing (XLA side): NCHW->NHWC, conv zero padding, im2col along W.
    # TODO(synk): for very large images on v7x (64 MiB VMEM) block the H axis
    # with a (th+2)-row halo (manual DMA) instead of staging the full per-batch
    # slab; the test shapes fit comfortably so the simple slab is kept.
    x_nhwc = jnp.transpose(xb, (0, 2, 3, 1))                          # (N,H,W,Cin)
    xp = jnp.pad(x_nhwc, ((0, 0), (1, 1 + h_pad - H), (1, 1), (0, 0)))
    # xcat[n, h, w, dx*Cin + ci] = xp[n, h, w + dx, ci]
    xcat = jnp.concatenate([xp[:, :, dx:dx + W, :] for dx in range(3)], axis=-1)
    if wp != W:
        xcat = jnp.pad(xcat, ((0, 0), (0, 0), (0, wp - W), (0, 0)))
    # Weights: OIHW -> HWIO -> (dy, 3*Cin, Cout), matching the xcat channel order.
    w_hwio = jnp.transpose(wb, (2, 3, 1, 0))                          # (3,3,Cin,Cout)
    w_k = w_hwio.reshape(3, 3 * Cin, Cout)
    b2d = bias.reshape(1, Cout).astype(jnp.float32)

    out_dtype = x_nchw.dtype
    out_itemsize = jnp.dtype(out_dtype).itemsize

    # Grid order: keep the bigger operand resident across the other axes.
    w_tile_bytes = 3 * kc * ct * 2
    slab_bytes = hs * wp * kc * 2
    co_outer = (n_co > 1) and (N > 1) and (w_tile_bytes > slab_bytes)
    if co_outer:
        grid = (n_co, N, n_rt)
        x_map = lambda co, b, rt: (b, 0, 0, 0)
        w_map = lambda co, b, rt: (0, 0, co)
        b_map = lambda co, b, rt: (0, co)
        o_map = lambda co, b, rt: (b, rt, 0, co)
    else:
        grid = (N, n_co, n_rt)
        x_map = lambda b, co, rt: (b, 0, 0, 0)
        w_map = lambda b, co, rt: (0, 0, co)
        b_map = lambda b, co, rt: (0, co)
        o_map = lambda b, co, rt: (b, rt, 0, co)

    # VMEM budget from the actual (double-buffered) blocks + generous headroom,
    # instead of a blanket limit (v7x only has 64 MiB of VMEM per TensorCore).
    buf_bytes = (2 * slab_bytes                        # x slab (double-buffered)
                 + 2 * w_tile_bytes                    # weight tile
                 + 2 * ct * 4                          # bias
                 + 2 * th * wp * ct * out_itemsize     # output tile
                 + th * wp * ct * 4)                   # f32 accumulator scratch
    vmem_limit = int(min(max(2 * buf_bytes + (16 << 20), 16 << 20), 96 << 20))

    out_nhwc = pl.pallas_call(
        _conv3x3_tanh_kernel,
        out_shape=jax.ShapeDtypeStruct((N, h_pad, wp, Cout), out_dtype),
        grid_spec=pltpu.PrefetchScalarGridSpec(
            num_scalar_prefetch=0,
            grid=grid,
            in_specs=[
                # Full padded slab per batch element (constant across co/rt).
                pl.BlockSpec((1, hs, wp, kc), x_map),
                # Weight / bias tiles: constant across b/rt -> stay resident.
                pl.BlockSpec((3, kc, ct), w_map),
                pl.BlockSpec((1, ct), b_map),
            ],
            out_specs=pl.BlockSpec((1, th, wp, ct), o_map),
            scratch_shapes=[pltpu.VMEM((th * wp, ct), jnp.float32)],
        ),
        compiler_params=pltpu.CompilerParams(
            dimension_semantics=("parallel", "parallel", "parallel"),
            vmem_limit_bytes=vmem_limit),
    )(xcat, w_k, b2d)

    out_nhwc = out_nhwc[:, :H, :W, :]                  # drop row/col padding
    # TODO(synk): the NHWC<->NCHW transposes exist only to honor the PyTorch
    # NCHW interface; drop them if the surrounding model runs NHWC end-to-end.
    return jnp.transpose(out_nhwc, (0, 3, 1, 2))       # NHWC -> NCHW


def _reference(x_nchw, w_oihw, bias):
    # Same bf16 inputs / f32 accumulation as the kernel for a tight comparison.
    y = lax.conv_general_dilated(
        x_nchw.astype(jnp.bfloat16), w_oihw.astype(jnp.bfloat16),
        window_strides=(1, 1), padding="SAME",
        dimension_numbers=("NCHW", "OIHW", "NCHW"),
        preferred_element_type=jnp.float32)
    return jnp.tanh(y + bias[None, :, None, None])


if __name__ == "__main__":
    # Small shapes consistent with Conv2d(C, C, 3, padding=1); C=128 keeps the
    # channel (lane) axis dense as required for good TPU utilization.
    N, C, H, W = 2, 128, 16, 16
    key = jax.random.PRNGKey(0)
    kx, kw, kb = jax.random.split(key, 3)

    x = jax.random.normal(kx, (N, C, H, W), dtype=jnp.float32)
    fan_in = C * 3 * 3
    bound = 1.0 / (fan_in ** 0.5)
    w = jax.random.uniform(kw, (C, C, 3, 3), jnp.float32, -bound, bound)
    b = jax.random.uniform(kb, (C,), jnp.float32, -bound, bound)

    out = jax.block_until_ready(conv3x3_tanh(x, w, b))
    ref = _reference(x, w, b)

    assert out.shape == (N, C, H, W)
    max_err = float(jnp.max(jnp.abs(out - ref)))
    assert jnp.allclose(out, ref, atol=5e-3, rtol=5e-3), f"mismatch vs reference: {max_err}"

    print("KERNEL_OK")
</pallas_src>

<mosaic_0001>
module attributes {stable_mosaic.version = 11 : i64} {
  func.func @_conv3x3_tanh_kernel(%arg0: i32, %arg1: i32, %arg2: i32, %arg3: memref<1x18x16x384xbf16, #tpu.memory_space<vmem>>, %arg4: memref<3x384x128xbf16, #tpu.memory_space<vmem>>, %arg5: memref<1x128xf32, #tpu.memory_space<vmem>>, %arg6: memref<1x16x16x128xf32, #tpu.memory_space<vmem>>, %arg7: memref<256x128xf32, #tpu.memory_space<vmem>>) attributes {dimension_semantics = [#tpu.dimension_semantics<parallel>, #tpu.dimension_semantics<parallel>, #tpu.dimension_semantics<parallel>], iteration_bounds = array<i64: 2, 1, 1>, scalar_prefetch = 0 : i64, scratch_operands = 1 : i64, tpu.core_type = #tpu.core_type<tc>, window_params = [{transform_indices = @transform_0, window_bounds = array<i64: 1, 18, 16, 384>}, {transform_indices = @transform_1, window_bounds = array<i64: 3, 384, 128>}, {transform_indices = @transform_2, window_bounds = array<i64: 1, 128>}, {transform_indices = @transform_3, window_bounds = array<i64: 1, 16, 16, 128>}]} {
    %c16_i32 = arith.constant 16 : i32
    %0 = arith.muli %arg2, %c16_i32 : i32
    %1 = tpu.assume_multiple %0, 16 : i32
    %c0_i32 = arith.constant 0 : i32
    %2 = arith.addi %1, %c0_i32 : i32
    %c0 = arith.constant 0 : index
    %3 = arith.index_cast %2 : i32 to index
    %c0_0 = arith.constant 0 : index
    %c0_1 = arith.constant 0 : index
    %4 = vector.load %arg3[%c0, %3, %c0_0, %c0_1] : memref<1x18x16x384xbf16, #tpu.memory_space<vmem>>, vector<1x16x16x384xbf16>
    %5 = vector.shape_cast %4 : vector<1x16x16x384xbf16> to vector<16x16x384xbf16>
    %6 = vector.shape_cast %5 : vector<16x16x384xbf16> to vector<256x384xbf16>
    %c0_2 = arith.constant 0 : index
    %c0_3 = arith.constant 0 : index
    %c0_4 = arith.constant 0 : index
    %7 = vector.load %arg4[%c0_2, %c0_3, %c0_4] : memref<3x384x128xbf16, #tpu.memory_space<vmem>>, vector<1x384x128xbf16>
    %8 = vector.shape_cast %7 : vector<1x384x128xbf16> to vector<384x128xbf16>
    %cst = arith.constant dense<0.000000e+00> : vector<256x128xf32>
    %9 = tpu.matmul %6, %8, %cst {dimension_numbers = #tpu.dot_dimension_numbers<[1], [0], [0], [1], [0, 0, 1, 1], [], []>} : vector<256x384xbf16>, vector<384x128xbf16>, vector<256x128xf32> -> vector<256x128xf32>
    %c0_5 = arith.constant 0 : index
    %c0_6 = arith.constant 0 : index
    %10 = vector.load %arg7[%c0_5, %c0_6] : memref<256x128xf32, #tpu.memory_space<vmem>>, vector<256x128xf32>
    tpu.vector_store %arg7[%c0_5, %c0_6], %9 {strides = array<i32>} : memref<256x128xf32, #tpu.memory_space<vmem>>, vector<256x128xf32>,
    %c1_i32 = arith.constant 1 : i32
    %11 = arith.addi %1, %c1_i32 : i32
    %c0_7 = arith.constant 0 : index
    %12 = arith.index_cast %11 : i32 to index
    %c0_8 = arith.constant 0 : index
    %c0_9 = arith.constant 0 : index
    %13 = vector.load %arg3[%c0_7, %12, %c0_8, %c0_9] : memref<1x18x16x384xbf16, #tpu.memory_space<vmem>>, vector<1x16x16x384xbf16>
    %14 = vector.shape_cast %13 : vector<1x16x16x384xbf16> to vector<16x16x384xbf16>
    %15 = vector.shape_cast %14 : vector<16x16x384xbf16> to vector<256x384xbf16>
    %c1 = arith.constant 1 : index
    %c0_10 = arith.constant 0 : index
    %c0_11 = arith.constant 0 : index
    %16 = vector.load %arg4[%c1, %c0_10, %c0_11] : memref<3x384x128xbf16, #tpu.memory_space<vmem>>, vector<1x384x128xbf16>
    %17 = vector.shape_cast %16 : vector<1x384x128xbf16> to vector<384x128xbf16>
    %cst_12 = arith.constant dense<0.000000e+00> : vector<256x128xf32>
    %18 = tpu.matmul %15, %17, %cst_12 {dimension_numbers = #tpu.dot_dimension_numbers<[1], [0], [0], [1], [0, 0, 1, 1], [], []>} : vector<256x384xbf16>, vector<384x128xbf16>, vector<256x128xf32> -> vector<256x128xf32>
    %c0_13 = arith.constant 0 : index
    %c0_14 = arith.constant 0 : index
    %19 = vector.load %arg7[%c0_13, %c0_14] : memref<256x128xf32, #tpu.memory_space<vmem>>, vector<256x128xf32>
    %20 = arith.addf %19, %18 : vector<256x128xf32>
    %c0_15 = arith.constant 0 : index
    %c0_16 = arith.constant 0 : index
    %21 = vector.load %arg7[%c0_15, %c0_16] : memref<256x128xf32, #tpu.memory_space<vmem>>, vector<256x128xf32>
    tpu.vector_store %arg7[%c0_15, %c0_16], %20 {strides = array<i32>} : memref<256x128xf32, #tpu.memory_space<vmem>>, vector<256x128xf32>,
    %c2_i32 = arith.constant 2 : i32
    %22 = arith.addi %1, %c2_i32 : i32
    %c0_17 = arith.constant 0 : index
    %23 = arith.index_cast %22 : i32 to index
    %c0_18 = arith.constant 0 : index
    %c0_19 = arith.constant 0 : index
    %24 = vector.load %arg3[%c0_17, %23, %c0_18, %c0_19] : memref<1x18x16x384xbf16, #tpu.memory_space<vmem>>, vector<1x16x16x384xbf16>
    %25 = vector.shape_cast %24 : vector<1x16x16x384xbf16> to vector<16x16x384xbf16>
    %26 = vector.shape_cast %25 : vector<16x16x384xbf16> to vector<256x384xbf16>
    %c2 = arith.constant 2 : index
    %c0_20 = arith.constant 0 : index
    %c0_21 = arith.constant 0 : index
    %27 = vector.load %arg4[%c2, %c0_20, %c0_21] : memref<3x384x128xbf16, #tpu.memory_space<vmem>>, vector<1x384x128xbf16>
    %28 = vector.shape_cast %27 : vector<1x384x128xbf16> to vector<384x128xbf16>
    %cst_22 = arith.constant dense<0.000000e+00> : vector<256x128xf32>
    %29 = tpu.matmul %26, %28, %cst_22 {dimension_numbers = #tpu.dot_dimension_numbers<[1], [0], [0], [1], [0, 0, 1, 1], [], []>} : vector<256x384xbf16>, vector<384x128xbf16>, vector<256x128xf32> -> vector<256x128xf32>
    %c0_23 = arith.constant 0 : index
    %c0_24 = arith.constant 0 : index
    %30 = vector.load %arg7[%c0_23, %c0_24] : memref<256x128xf32, #tpu.memory_space<vmem>>, vector<256x128xf32>
    %31 = arith.addf %30, %29 : vector<256x128xf32>
    %c0_25 = arith.constant 0 : index
    %c0_26 = arith.constant 0 : index
    %32 = vector.load %arg7[%c0_25, %c0_26] : memref<256x128xf32, #tpu.memory_space<vmem>>, vector<256x128xf32>
    tpu.vector_store %arg7[%c0_25, %c0_26], %31 {strides = array<i32>} : memref<256x128xf32, #tpu.memory_space<vmem>>, vector<256x128xf32>,
    %c0_27 = arith.constant 0 : index
    %c0_28 = arith.constant 0 : index
    %33 = vector.load %arg7[%c0_27, %c0_28] : memref<256x128xf32, #tpu.memory_space<vmem>>, vector<256x128xf32>
    %c0_29 = arith.constant 0 : index
    %c0_30 = arith.constant 0 : index
    %34 = vector.load %arg5[%c0_29, %c0_30] : memref<1x128xf32, #tpu.memory_space<vmem>>, vector<1x128xf32>
    %35 = vector.broadcast %34 : vector<1x128xf32> to vector<256x128xf32>
    %36 = arith.addf %33, %35 : vector<256x128xf32>
    %37 = math.tanh %36 : vector<256x128xf32>
    %38 = vector.shape_cast %37 : vector<256x128xf32> to vector<16x16x128xf32>
    %39 = vector.shape_cast %38 : vector<16x16x128xf32> to vector<1x16x16x128xf32>
    %c0_31 = arith.constant 0 : index
    %c0_32 = arith.constant 0 : index
    %c0_33 = arith.constant 0 : index
    %c0_34 = arith.constant 0 : index
    %40 = vector.load %arg6[%c0_31, %c0_32, %c0_33, %c0_34] : memref<1x16x16x128xf32, #tpu.memory_space<vmem>>, vector<1x16x16x128xf32>
    tpu.vector_store %arg6[%c0_31, %c0_32, %c0_33, %c0_34], %39 {strides = array<i32>} : memref<1x16x16x128xf32, #tpu.memory_space<vmem>>, vector<1x16x16x128xf32>,
    return
  }
  func.func @transform_0(%arg0: i32, %arg1: i32, %arg2: i32) -> (i32, i32, i32, i32) {
    %c0_i32 = arith.constant 0 : i32
    %c0_i32_0 = arith.constant 0 : i32
    %c0_i32_1 = arith.constant 0 : i32
    %c0_i32_2 = arith.constant 0 : i32
    return %arg0, %c0_i32, %c0_i32_0, %c0_i32_1 : i32, i32, i32, i32
  }
  func.func @transform_1(%arg0: i32, %arg1: i32, %arg2: i32) -> (i32, i32, i32) {
    %c0_i32 = arith.constant 0 : i32
    %c0_i32_0 = arith.constant 0 : i32
    %c0_i32_1 = arith.constant 0 : i32
    return %c0_i32, %c0_i32_0, %arg1 : i32, i32, i32
  }
  func.func @transform_2(%arg0: i32, %arg1: i32, %arg2: i32) -> (i32, i32) {
    %c0_i32 = arith.constant 0 : i32
    %c0_i32_0 = arith.constant 0 : i32
    return %c0_i32, %arg1 : i32, i32
  }
  func.func @transform_3(%arg0: i32, %arg1: i32, %arg2: i32) -> (i32, i32, i32, i32) {
    %c0_i32 = arith.constant 0 : i32
    %c0_i32_0 = arith.constant 0 : i32
    return %arg0, %arg2, %c0_i32, %arg1 : i32, i32, i32, i32
  }
}

</mosaic_0001>

<llo_original>
// kernel: conv3x3_tanh.1
$region0: #{conv3x3_tanh.1}
  #allocation0 [shape = 'u32[]', space=smem, size = 0x4, offset = 0x4, fixed_abs, tag = 'smem constant byte address 0x4 - core index']
  #allocation1 [shape = 'u32[144,128]{1,0:T(1,128)}', space=vmem, size = 0x12000, scoped, tag = 'internal scratch']
  #allocation2 [shape = 'f32[256,128]{1,0:T(8,128)}', space=vmem, size = 0x20000, scoped, tag = 'scratch operand']
  %s0 = inlined_call_operand.vmem [shape: bf16[2,18,16,384], index: 0, kind: input, shape index: {}]
  %s1 = inlined_call_operand.vmem [shape: bf16[3,384,128], index: 1, kind: input, shape index: {}]
  %s2 = inlined_call_operand.vmem [shape: f32[1,128], index: 2, kind: input, shape index: {}]
  %s3 = inlined_call_operand.hbm [shape: f32[2,16,16,128], index: 3, kind: output, shape index: {}]
  %s4 = sld [smem:[#allocation0]]
  $region45: #{conv3x3_tanh.1} parent=0
    _
  %s6 = ssub.s32 1, %s4
  %s7 = scalar_select 0, %s6, %s4
  $region1: #{conv3x3_tanh.1} parent=0
    #allocation3 [shape = 'u8[262144]{0}', space=vmem, size = 0x40000, scoped, tag = 'output window, operand 0']
    #allocation4 [shape = 's32[2]{0}', space=sflag, size = 0x8, scoped, tag = 'scoped memory for conv3x3_tanh.1']
    %8 = vsyncpa [#allocation4], 0
    %s9 = scalar_lea.sflag [#allocation4], 1
    %10 = vsyncpa %s9, 0
    loop: start=0, step=1, limit=4
    $region2: #{conv3x3_tanh.1} parent=1 // loop_pre_header
      _
    $region3: #{conv3x3_tanh.1} parent=1 // loop_header
      %s12 = sphi 0, %s16
      %p13 = scmp.ge.s32.totalorder %s12, 4
      %s19 = sphi 0, %s38
      %s20 = sphi 0, %s34
      %s21 = sphi 0, %s30
      %s22 = sphi 0, %s19
      %s23 = sphi 0, %s20
      %s24 = sphi 0, %s21
      %s25 = sphi 0, %s22
      %s26 = sphi 0, %s23
      %s27 = sphi 0, %s24
      %s41 = sphi 0, %s43
      %s44 = sphi 0, %s41
      %s45 = sphi 0, %s44
      %s61 = sphi 0, %s45
      %s67 = sphi 0, %s69
      %s70 = sphi 0, %s67
      %s71 = sphi 0, %s70
      %s87 = sphi 0, %s71
      %s93 = sphi 0, %s95
      %s96 = sphi 0, %s93
      %s97 = sphi 0, %s96
      %s113 = sphi 0, %s97
      %s123 = sphi 0, %s125
      %s126 = sphi 0, %s123
      %s127 = sphi 0, %s126
      %s143 = sphi 0, %s127
    $region4: #{conv3x3_tanh.1} parent=1 // loop_header_branch
      %15 = sbr.rel (%p13) target = $region8
    $region5: #{conv3x3_tanh.1} parent=1 // loop_body
      %s17 = ssub.s32 %s12, 1
      %s18 = ssub.s32 %s12, 2
      %s28 = sadd.s32 1, %s21
      %p29 = scmp.ge.s32.totalorder %s28, 1
      %s30 = scalar_select %p29, 0, %s28
      %s31 = sadd.s32 1, %s20
      %s32 = scalar_select %p29, %s31, %s20
      %p33 = scmp.ge.s32.totalorder %s32, 1
      %s34 = scalar_select %p33, 0, %s32
      %s35 = sadd.s32 1, %s19
      %s36 = scalar_select %p33, %s35, %s19
      %p37 = scmp.ge.s32.totalorder %s36, 2
      %s38 = scalar_select %p37, 0, %s36
      %s39 = ssub.s32 %s19, %s38
      %p40 = scmp.eq.s32.totalorder %s39, 0
      %s42 = sadd.s32 %s41, 1
      %s43 = scalar_select %p40, %s41, %s42
      %p46 = pneg %p40
      %p47 = scmp.eq.s32.totalorder %s12, 1
      %p48 = por %p46, %p47
      %p49 = scmp.ne.s32.totalorder %s41, %s44
      %p50 = scmp.eq.s32.totalorder %s12, 0
      %p51 = por %p49, %p50
      %p52 = scmp.ne.s32.totalorder %s41, %s44
      %p53 = scmp.eq.s32.totalorder %s17, 1
      %p54 = por %p52, %p53
      %p55 = scmp.ne.s32.totalorder %s44, %s45
      %p56 = scmp.eq.s32.totalorder %s17, 0
      %p57 = por %p55, %p56
      %p58 = scmp.ne.s32.totalorder %s44, %s45
      %p59 = scmp.eq.s32.totalorder %s18, 1
      %p60 = por %p58, %p59
      %p62 = scmp.ne.s32.totalorder %s45, %s61
      %p63 = scmp.eq.s32.totalorder %s18, 0
      %p64 = por %p62, %p63
      %s65 = ssub.s32 %s20, %s34
      %p66 = scmp.eq.s32.totalorder %s65, 0
      %s68 = sadd.s32 %s67, 1
      %s69 = scalar_select %p66, %s67, %s68
      %p72 = pneg %p66
      %p73 = scmp.eq.s32.totalorder %s12, 1
      %p74 = por %p72, %p73
      %p75 = scmp.ne.s32.totalorder %s67, %s70
      %p76 = scmp.eq.s32.totalorder %s12, 0
      %p77 = por %p75, %p76
      %p78 = scmp.ne.s32.totalorder %s67, %s70
      %p79 = scmp.eq.s32.totalorder %s17, 1
      %p80 = por %p78, %p79
      %p81 = scmp.ne.s32.totalorder %s70, %s71
      %p82 = scmp.eq.s32.totalorder %s17, 0
      %p83 = por %p81, %p82
      %p84 = scmp.ne.s32.totalorder %s70, %s71
      %p85 = scmp.eq.s32.totalorder %s18, 1
      %p86 = por %p84, %p85
      %p88 = scmp.ne.s32.totalorder %s71, %s87
      %p89 = scmp.eq.s32.totalorder %s18, 0
      %p90 = por %p88, %p89
      %s91 = ssub.s32 %s20, %s34
      %p92 = scmp.eq.s32.totalorder %s91, 0
      %s94 = sadd.s32 %s93, 1
      %s95 = scalar_select %p92, %s93, %s94
      %p98 = pneg %p92
      %p99 = scmp.eq.s32.totalorder %s12, 1
      %p100 = por %p98, %p99
      %p101 = scmp.ne.s32.totalorder %s93, %s96
      %p102 = scmp.eq.s32.totalorder %s12, 0
      %p103 = por %p101, %p102
      %p104 = scmp.ne.s32.totalorder %s93, %s96
      %p105 = scmp.eq.s32.totalorder %s17, 1
      %p106 = por %p104, %p105
      %p107 = scmp.ne.s32.totalorder %s96, %s97
      %p108 = scmp.eq.s32.totalorder %s17, 0
      %p109 = por %p107, %p108
      %p110 = scmp.ne.s32.totalorder %s96, %s97
      %p111 = scmp.eq.s32.totalorder %s18, 1
      %p112 = por %p110, %p111
      %p114 = scmp.ne.s32.totalorder %s97, %s113
      %p115 = scmp.eq.s32.totalorder %s18, 0
      %p116 = por %p114, %p115
      %s117 = ssub.s32 %s19, %s38
      %s118 = ssub.s32 %s21, %s30
      %s119 = sor.u32 %s117, %s118
      %s120 = ssub.s32 %s20, %s34
      %s121 = sor.u32 %s119, %s120
      %p122 = scmp.eq.s32.totalorder %s121, 0
      %s124 = sadd.s32 %s123, 1
      %s125 = scalar_select %p122, %s123, %s124
      %p128 = pneg %p122
      %p129 = scmp.eq.s32.totalorder %s12, 1
      %p130 = por %p128, %p129
      %p131 = scmp.ne.s32.totalorder %s123, %s126
      %p132 = scmp.eq.s32.totalorder %s12, 0
      %p133 = por %p131, %p132
      %p134 = scmp.ne.s32.totalorder %s123, %s126
      %p135 = scmp.eq.s32.totalorder %s17, 1
      %p136 = por %p134, %p135
      %p137 = scmp.ne.s32.totalorder %s126, %s127
      %p138 = scmp.eq.s32.totalorder %s17, 0
      %p139 = por %p137, %p138
      %p140 = scmp.ne.s32.totalorder %s126, %s127
      %p141 = scmp.eq.s32.totalorder %s18, 1
      %p142 = por %p140, %p141
      %p144 = scmp.ne.s32.totalorder %s127, %s143
      %p145 = scmp.eq.s32.totalorder %s18, 0
      %p146 = por %p144, %p145
      %p147 = scmp.le.s32.totalorder 1, %s12
      %p148 = scmp.lt.s32.totalorder %s12, 3
      %p149 = pnand %p147, %p148
      %p150 = pneg %p149
      // Predicated region
      $region9: #{conv3x3_tanh.1} parent=5 // pred_check
        _
      $region10: #{conv3x3_tanh.1} parent=5 // pred_check_branch
        %152 = sbr.rel (%p149) target = $region12
      $region11: #{conv3x3_tanh.1} parent=5 // pred_region
        %s153 = ssub.s32 %s12, 1
        // Predicated region
        $region13: #{conv3x3_tanh.1} parent=11 // pred_check
          %p154 = pneg %p83
        $region14: #{conv3x3_tanh.1} parent=11 // pred_check_branch
          %156 = sbr.rel (%p154) target = $region16
        $region15: #{conv3x3_tanh.1} parent=11 // pred_region
          %p157 = scmp.lt.s32.totalorder %s23, 0
          %s158 = scalar_select %p157, %s23, 0
          %s159 = smul.addr %s158, 4
          %s160 = scalar_lea.vmem %s1, %s159
        $region16: #{conv3x3_tanh.1} parent=11 // pred_fallthru
          _
        // Predicated region
        $region17: #{conv3x3_tanh.1} parent=11 // pred_check
          %p161 = pneg %p109
        $region18: #{conv3x3_tanh.1} parent=11 // pred_check_branch
          %163 = sbr.rel (%p161) target = $region20
        $region19: #{conv3x3_tanh.1} parent=11 // pred_region
          %p164 = scmp.lt.s32.totalorder %s23, 0
          %s165 = scalar_select %p164, %s23, 0
          %s166 = scalar_lea.vmem %s2, %s165
        $region20: #{conv3x3_tanh.1} parent=11 // pred_fallthru
          _
      $region12: #{conv3x3_tanh.1} parent=5 // pred_fallthru
        _
      %p167 = scmp.lt.s32.totalorder %s12, 2
      // Predicated region
      $region21: #{conv3x3_tanh.1} parent=5 // pred_check
        %p168 = pneg %p167
      $region22: #{conv3x3_tanh.1} parent=5 // pred_check_branch
        %170 = sbr.rel (%p168) target = $region24
      $region23: #{conv3x3_tanh.1} parent=5 // pred_region
        // Predicated region
        $region25: #{conv3x3_tanh.1} parent=23 // pred_check
          %p171 = pneg %p51
        $region26: #{conv3x3_tanh.1} parent=23 // pred_check_branch
          %173 = sbr.rel (%p171) target = $region28
        $region27: #{conv3x3_tanh.1} parent=23 // pred_region
          %p174 = scmp.lt.s32.totalorder %s19, 1
          %s175 = scalar_select %p174, %s19, 1
          %s176 = smul.addr %s175, 108
          %s177 = smul.addr %s176, 4
          %s178 = scalar_lea.vmem %s0, %s177
        $region28: #{conv3x3_tanh.1} parent=23 // pred_fallthru
          _
      $region24: #{conv3x3_tanh.1} parent=5 // pred_fallthru
        _
      %p179 = scmp.le.s32.totalorder 1, %s12
      %p180 = scmp.lt.s32.totalorder %s12, 3
      %p181 = pnand %p179, %p180
      %p182 = pneg %p181
      // Predicated region
      $region29: #{conv3x3_tanh.1} parent=5 // pred_check
        _
      $region30: #{conv3x3_tanh.1} parent=5 // pred_check_branch
        %184 = sbr.rel (%p181) target = $region32
      $region31: #{conv3x3_tanh.1} parent=5 // pred_region
        %s185 = ssub.s32 %s12, 1
        %p186 = scmp.lt.s32.totalorder %s22, 1
        %s187 = scalar_select %p186, %s22, 1
        %s188 = smul.addr %s187, 108
        %s189 = smul.addr %s188, 4
        %s190 = scalar_lea.vmem %s0, %s189
        %p191 = pneg %p57
        %p192 = pneg %p54
        %p193 = scmp.lt.s32.totalorder %s23, 0
        %s194 = scalar_select %p193, %s23, 0
        %s195 = smul.addr %s194, 4
        %s196 = scalar_lea.vmem %s1, %s195
        %p197 = pneg %p83
        %p198 = pneg %p80
        %p199 = scmp.lt.s32.totalorder %s23, 0
        %s200 = scalar_select %p199, %s23, 0
        %s201 = scalar_lea.vmem %s2, %s200
        %p202 = pneg %p109
        %p203 = pneg %p106
        %p204 = pneg %p139
        %p205 = pneg %p136
        %s206 = sand.u32 %s126, 1
        %s207 = scalar_lea.sflag [#allocation4], %s206
        %s208 = sand.u32 %s126, 1
        %s209 = smul.addr %s208, 256
        %s210 = scalar_lea.vmem [#allocation3], %s209
        %p211 = scmp.lt.s32.totalorder %s22, 1
        %s212 = scalar_select %p211, %s22, 1
        %s213 = smul.addr %s212, 108
        %s214 = smul.addr %s213, 4
        %s215 = scalar_lea.vmem %s0, %s214
        %p216 = scmp.lt.s32.totalorder %s23, 0
        %s217 = scalar_select %p216, %s23, 0
        %s218 = smul.addr %s217, 4
        %s219 = scalar_lea.vmem %s1, %s218
        %p220 = scmp.lt.s32.totalorder %s23, 0
        %s221 = scalar_select %p220, %s23, 0
        %s222 = scalar_lea.vmem %s2, %s221
        %s223 = smul.u32 16, %s24
        %s225 = smul.u32 %s24, 16
        %s226 = smul.u32 %s225, 6
        %s227 = smul.addr %s226, 4
        %s228 = scalar_lea.vmem %s215, %s227
        %v229 = vld [vmem:[%s228] sm:$0xff]
        %v230 = vld [vmem:[%s228 + $0x8] sm:$0xf]
        %v231 = vld [vmem:[%s228 + $0xc] sm:$0xff]
        %v232 = vld [vmem:[%s228 + $0x14] sm:$0xf]
        %v233 = vld [vmem:[%s228 + $0x18] sm:$0xff]
        %v234 = vld [vmem:[%s228 + $0x20] sm:$0xf]
        %v235 = vld [vmem:[%s228 + $0x24] sm:$0xff]
        %v236 = vld [vmem:[%s228 + $0x2c] sm:$0xf]
        %v237 = vld [vmem:[%s228 + $0x30] sm:$0xff]
        %v238 = vld [vmem:[%s228 + $0x38] sm:$0xf]
        %v239 = vld [vmem:[%s228 + $0x3c] sm:$0xff]
        %v240 = vld [vmem:[%s228 + $0x44] sm:$0xf]
        %v241 = vld [vmem:[%s228 + $0x48] sm:$0xff]
        %v242 = vld [vmem:[%s228 + $0x50] sm:$0xf]
        %v243 = vld [vmem:[%s228 + $0x54] sm:$0xff]
        %v244 = vld [vmem:[%s228 + $0x5c] sm:$0xf]
        %v245 = vld [vmem:[%s228 + $0x60] sm:$0xff]
        %v246 = vld [vmem:[%s228 + $0x68] sm:$0xf]
        %v247 = vld [vmem:[%s228 + $0x6c] sm:$0xff]
        %v248 = vld [vmem:[%s228 + $0x74] sm:$0xf]
        %v249 = vld [vmem:[%s228 + $0x78] sm:$0xff]
        %v250 = vld [vmem:[%s228 + $0x80] sm:$0xf]
        %v251 = vld [vmem:[%s228 + $0x84] sm:$0xff]
        %v252 = vld [vmem:[%s228 + $0x8c] sm:$0xf]
        %v253 = vld [vmem:[%s228 + $0x90] sm:$0xff]
        %v254 = vld [vmem:[%s228 + $0x98] sm:$0xf]
        %v255 = vld [vmem:[%s228 + $0x9c] sm:$0xff]
        %v256 = vld [vmem:[%s228 + $0xa4] sm:$0xf]
        %v257 = vld [vmem:[%s228 + $0xa8] sm:$0xff]
        %v258 = vld [vmem:[%s228 + $0xb0] sm:$0xf]
        %v259 = vld [vmem:[%s228 + $0xb4] sm:$0xff]
        %v260 = vld [vmem:[%s228 + $0xbc] sm:$0xf]
        %v261 = vld [vmem:[%s228 + $0xc0] sm:$0xff]
        %v262 = vld [vmem:[%s228 + $0xc8] sm:$0xf]
        %v263 = vld [vmem:[%s228 + $0xcc] sm:$0xff]
        %v264 = vld [vmem:[%s228 + $0xd4] sm:$0xf]
        %v265 = vld [vmem:[%s228 + $0xd8] sm:$0xff]
        %v266 = vld [vmem:[%s228 + $0xe0] sm:$0xf]
        %v267 = vld [vmem:[%s228 + $0xe4] sm:$0xff]
        %v268 = vld [vmem:[%s228 + $0xec] sm:$0xf]
        %v269 = vld [vmem:[%s228 + $0xf0] sm:$0xff]
        %v270 = vld [vmem:[%s228 + $0xf8] sm:$0xf]
        %v271 = vld [vmem:[%s228 + $0xfc] sm:$0xff]
        %v272 = vld [vmem:[%s228 + $0x104] sm:$0xf]
        %v273 = vld [vmem:[%s228 + $0x108] sm:$0xff]
        %v274 = vld [vmem:[%s228 + $0x110] sm:$0xf]
        %v275 = vld [vmem:[%s228 + $0x114] sm:$0xff]
        %v276 = vld [vmem:[%s228 + $0x11c] sm:$0xf]
        %v277 = vld [vmem:[%s228 + $0x120] sm:$0xff]
        %v278 = vld [vmem:[%s228 + $0x128] sm:$0xf]
        %v279 = vld [vmem:[%s228 + $0x12c] sm:$0xff]
        %v280 = vld [vmem:[%s228 + $0x134] sm:$0xf]
        %v281 = vld [vmem:[%s228 + $0x138] sm:$0xff]
        %v282 = vld [vmem:[%s228 + $0x140] sm:$0xf]
        %v283 = vld [vmem:[%s228 + $0x144] sm:$0xff]
        %v284 = vld [vmem:[%s228 + $0x14c] sm:$0xf]
        %v285 = vld [vmem:[%s228 + $0x150] sm:$0xff]
        %v286 = vld [vmem:[%s228 + $0x158] sm:$0xf]
        %v287 = vld [vmem:[%s228 + $0x15c] sm:$0xff]
        %v288 = vld [vmem:[%s228 + $0x164] sm:$0xf]
        %v289 = vld [vmem:[%s228 + $0x168] sm:$0xff]
        %v290 = vld [vmem:[%s228 + $0x170] sm:$0xf]
        %v291 = vld [vmem:[%s228 + $0x174] sm:$0xff]
        %v292 = vld [vmem:[%s228 + $0x17c] sm:$0xf]
        %v293 = vld [vmem:[%s219] sm:$0xf]
        %v294 = vld [vmem:[%s219 + $0x4] sm:$0xf]
        %v295 = vld [vmem:[%s219 + $0x8] sm:$0xf]
        %v296 = vld [vmem:[%s219 + $0xc] sm:$0xf]
        %v297 = vld [vmem:[%s219 + $0x10] sm:$0xf]
        %v298 = vld [vmem:[%s219 + $0x14] sm:$0xf]
        %v299 = vld [vmem:[%s219 + $0x18] sm:$0xf]
        %v300 = vld [vmem:[%s219 + $0x1c] sm:$0xf]
        %v301 = vld [vmem:[%s219 + $0x20] sm:$0xf]
        %v302 = vld [vmem:[%s219 + $0x24] sm:$0xf]
        %v303 = vld [vmem:[%s219 + $0x28] sm:$0xf]
        %v304 = vld [vmem:[%s219 + $0x2c] sm:$0xf]
        %v305 = vld [vmem:[%s219 + $0x30] sm:$0xf]
        %v306 = vld [vmem:[%s219 + $0x34] sm:$0xf]
        %v307 = vld [vmem:[%s219 + $0x38] sm:$0xf]
        %v308 = vld [vmem:[%s219 + $0x3c] sm:$0xf]
        %v309 = vld [vmem:[%s219 + $0x40] sm:$0xf]
        %v310 = vld [vmem:[%s219 + $0x44] sm:$0xf]
        %v311 = vld [vmem:[%s219 + $0x48] sm:$0xf]
        %v312 = vld [vmem:[%s219 + $0x4c] sm:$0xf]
        %v313 = vld [vmem:[%s219 + $0x50] sm:$0xf]
        %v314 = vld [vmem:[%s219 + $0x54] sm:$0xf]
        %v315 = vld [vmem:[%s219 + $0x58] sm:$0xf]
        %v316 = vld [vmem:[%s219 + $0x5c] sm:$0xf]
        %v317 = vld [vmem:[%s219 + $0x60] sm:$0xf]
        %v318 = vld [vmem:[%s219 + $0x64] sm:$0xf]
        %v319 = vld [vmem:[%s219 + $0x68] sm:$0xf]
        %v320 = vld [vmem:[%s219 + $0x6c] sm:$0xf]
        %v321 = vld [vmem:[%s219 + $0x70] sm:$0xf]
        %v322 = vld [vmem:[%s219 + $0x74] sm:$0xf]
        %v323 = vld [vmem:[%s219 + $0x78] sm:$0xf]
        %v324 = vld [vmem:[%s219 + $0x7c] sm:$0xf]
        %v325 = vld [vmem:[%s219 + $0x80] sm:$0xf]
        %v326 = vld [vmem:[%s219 + $0x84] sm:$0xf]
        %v327 = vld [vmem:[%s219 + $0x88] sm:$0xf]
        %v328 = vld [vmem:[%s219 + $0x8c] sm:$0xf]
        %v329 = vld [vmem:[%s219 + $0x90] sm:$0xf]
        %v330 = vld [vmem:[%s219 + $0x94] sm:$0xf]
        %v331 = vld [vmem:[%s219 + $0x98] sm:$0xf]
        %v332 = vld [vmem:[%s219 + $0x9c] sm:$0xf]
        %v333 = vld [vmem:[%s219 + $0xa0] sm:$0xf]
        %v334 = vld [vmem:[%s219 + $0xa4] sm:$0xf]
        %v335 = vld [vmem:[%s219 + $0xa8] sm:$0xf]
        %v336 = vld [vmem:[%s219 + $0xac] sm:$0xf]
        %v337 = vld [vmem:[%s219 + $0xb0] sm:$0xf]
        %v338 = vld [vmem:[%s219 + $0xb4] sm:$0xf]
        %v339 = vld [vmem:[%s219 + $0xb8] sm:$0xf]
        %v340 = vld [vmem:[%s219 + $0xbc] sm:$0xf]
        %v405 = vunpack.c.l.b16 %v229
        %v406 = vunpack.c.h.b16 %v229
        %v407 = vunpack.c.l.b16 %v230
        %v408 = vunpack.c.l.b16 %v231
        %v409 = vunpack.c.h.b16 %v231
        %v410 = vunpack.c.l.b16 %v232
        %v411 = vunpack.c.l.b16 %v233
        %v412 = vunpack.c.h.b16 %v233
        %v413 = vunpack.c.l.b16 %v234
        %v414 = vunpack.c.l.b16 %v235
        %v415 = vunpack.c.h.b16 %v235
        %v416 = vunpack.c.l.b16 %v236
        %v417 = vunpack.c.l.b16 %v237
        %v418 = vunpack.c.h.b16 %v237
        %v419 = vunpack.c.l.b16 %v238
        %v420 = vunpack.c.l.b16 %v239
        %v421 = vunpack.c.h.b16 %v239
        %v422 = vunpack.c.l.b16 %v240
        %v423 = vunpack.c.l.b16 %v241
        %v424 = vunpack.c.h.b16 %v241
        %v425 = vunpack.c.l.b16 %v242
        %v426 = vunpack.c.l.b16 %v243
        %v427 = vunpack.c.h.b16 %v243
        %v428 = vunpack.c.l.b16 %v244
        %v429 = vunpack.c.l.b16 %v245
        %v430 = vunpack.c.h.b16 %v245
        %v431 = vunpack.c.l.b16 %v246
        %v432 = vunpack.c.l.b16 %v247
        %v433 = vunpack.c.h.b16 %v247
        %v434 = vunpack.c.l.b16 %v248
        %v435 = vunpack.c.l.b16 %v249
        %v436 = vunpack.c.h.b16 %v249
        %v437 = vunpack.c.l.b16 %v250
        %v438 = vunpack.c.l.b16 %v251
        %v439 = vunpack.c.h.b16 %v251
        %v440 = vunpack.c.l.b16 %v252
        %v441 = vunpack.c.l.b16 %v253
        %v442 = vunpack.c.h.b16 %v253
        %v443 = vunpack.c.l.b16 %v254
        %v444 = vunpack.c.l.b16 %v255
        %v445 = vunpack.c.h.b16 %v255
        %v446 = vunpack.c.l.b16 %v256
        %v447 = vunpack.c.l.b16 %v257
        %v448 = vunpack.c.h.b16 %v257
        %v449 = vunpack.c.l.b16 %v258
        %v450 = vunpack.c.l.b16 %v259
        %v451 = vunpack.c.h.b16 %v259
        %v452 = vunpack.c.l.b16 %v260
        %v453 = vunpack.c.l.b16 %v261
        %v454 = vunpack.c.h.b16 %v261
        %v455 = vunpack.c.l.b16 %v262
        %v456 = vunpack.c.l.b16 %v263
        %v457 = vunpack.c.h.b16 %v263
        %v458 = vunpack.c.l.b16 %v264
        %v459 = vunpack.c.l.b16 %v265
        %v460 = vunpack.c.h.b16 %v265
        %v461 = vunpack.c.l.b16 %v266
        %v462 = vunpack.c.l.b16 %v267
        %v463 = vunpack.c.h.b16 %v267
        %v464 = vunpack.c.l.b16 %v268
        %v465 = vunpack.c.l.b16 %v269
        %v466 = vunpack.c.h.b16 %v269
        %v467 = vunpack.c.l.b16 %v270
        %v468 = vunpack.c.l.b16 %v271
        %v469 = vunpack.c.h.b16 %v271
        %v470 = vunpack.c.l.b16 %v272
        %v471 = vunpack.c.l.b16 %v273
        %v472 = vunpack.c.h.b16 %v273
        %v473 = vunpack.c.l.b16 %v274
        %v474 = vunpack.c.l.b16 %v275
        %v475 = vunpack.c.h.b16 %v275
        %v476 = vunpack.c.l.b16 %v276
        %v477 = vunpack.c.l.b16 %v277
        %v478 = vunpack.c.h.b16 %v277
        %v479 = vunpack.c.l.b16 %v278
        %v480 = vunpack.c.l.b16 %v279
        %v481 = vunpack.c.h.b16 %v279
        %v482 = vunpack.c.l.b16 %v280
        %v483 = vunpack.c.l.b16 %v281
        %v484 = vunpack.c.h.b16 %v281
        %v485 = vunpack.c.l.b16 %v282
        %v486 = vunpack.c.l.b16 %v283
        %v487 = vunpack.c.h.b16 %v283
        %v488 = vunpack.c.l.b16 %v284
        %v489 = vunpack.c.l.b16 %v285
        %v490 = vunpack.c.h.b16 %v285
        %v491 = vunpack.c.l.b16 %v286
        %v492 = vunpack.c.l.b16 %v287
        %v493 = vunpack.c.h.b16 %v287
        %v494 = vunpack.c.l.b16 %v288
        %v495 = vunpack.c.l.b16 %v289
        %v496 = vunpack.c.h.b16 %v289
        %v497 = vunpack.c.l.b16 %v290
        %v498 = vunpack.c.l.b16 %v291
        %v499 = vunpack.c.h.b16 %v291
        %v500 = vunpack.c.l.b16 %v292
        %v501 = vpack.c.b16 %v408, %v405
        %v502 = vpack.c.b16 %v409, %v406
        %v503 = vpack.c.b16 %v410, %v407
        %v504 = vpack.c.b16 %v414, %v411
        %v505 = vpack.c.b16 %v415, %v412
        %v506 = vpack.c.b16 %v416, %v413
        %v507 = vpack.c.b16 %v420, %v417
        %v508 = vpack.c.b16 %v421, %v418
        %v509 = vpack.c.b16 %v422, %v419
        %v510 = vpack.c.b16 %v426, %v423
        %v511 = vpack.c.b16 %v427, %v424
        %v512 = vpack.c.b16 %v428, %v425
        %v513 = vpack.c.b16 %v432, %v429
        %v514 = vpack.c.b16 %v433, %v430
        %v515 = vpack.c.b16 %v434, %v431
        %v516 = vpack.c.b16 %v438, %v435
        %v517 = vpack.c.b16 %v439, %v436
        %v518 = vpack.c.b16 %v440, %v437
        %v519 = vpack.c.b16 %v444, %v441
        %v520 = vpack.c.b16 %v445, %v442
        %v521 = vpack.c.b16 %v446, %v443
        %v522 = vpack.c.b16 %v450, %v447
        %v523 = vpack.c.b16 %v451, %v448
        %v524 = vpack.c.b16 %v452, %v449
        %v525 = vpack.c.b16 %v456, %v453
        %v526 = vpack.c.b16 %v457, %v454
        %v527 = vpack.c.b16 %v458, %v455
        %v528 = vpack.c.b16 %v462, %v459
        %v529 = vpack.c.b16 %v463, %v460
        %v530 = vpack.c.b16 %v464, %v461
        %v531 = vpack.c.b16 %v468, %v465
        %v532 = vpack.c.b16 %v469, %v466
        %v533 = vpack.c.b16 %v470, %v467
        %v534 = vpack.c.b16 %v474, %v471
        %v535 = vpack.c.b16 %v475, %v472
        %v536 = vpack.c.b16 %v476, %v473
        %v537 = vpack.c.b16 %v480, %v477
        %v538 = vpack.c.b16 %v481, %v478
        %v539 = vpack.c.b16 %v482, %v479
        %v540 = vpack.c.b16 %v486, %v483
        %v541 = vpack.c.b16 %v487, %v484
        %v542 = vpack.c.b16 %v488, %v485
        %v543 = vpack.c.b16 %v492, %v489
        %v544 = vpack.c.b16 %v493, %v490
        %v545 = vpack.c.b16 %v494, %v491
        %v546 = vpack.c.b16 %v498, %v495
        %v547 = vpack.c.b16 %v499, %v496
        %v548 = vpack.c.b16 %v500, %v497
        %v645 = vunpack.c.l.b16 %v293
        %v646 = vunpack.c.l.b16 %v294
        %v647 = vunpack.c.l.b16 %v295
        %v648 = vunpack.c.l.b16 %v296
        %v649 = vunpack.c.l.b16 %v297
        %v650 = vunpack.c.l.b16 %v298
        %v651 = vunpack.c.l.b16 %v299
        %v652 = vunpack.c.l.b16 %v300
        %v653 = vunpack.c.l.b16 %v301
        %v654 = vunpack.c.l.b16 %v302
        %v655 = vunpack.c.l.b16 %v303
        %v656 = vunpack.c.l.b16 %v304
        %v657 = vunpack.c.l.b16 %v305
        %v658 = vunpack.c.l.b16 %v306
        %v659 = vunpack.c.l.b16 %v307
        %v660 = vunpack.c.l.b16 %v308
        %v661 = vunpack.c.l.b16 %v309
        %v662 = vunpack.c.l.b16 %v310
        %v663 = vunpack.c.l.b16 %v311
        %v664 = vunpack.c.l.b16 %v312
        %v665 = vunpack.c.l.b16 %v313
        %v666 = vunpack.c.l.b16 %v314
        %v667 = vunpack.c.l.b16 %v315
        %v668 = vunpack.c.l.b16 %v316
        %v669 = vunpack.c.l.b16 %v317
        %v670 = vunpack.c.l.b16 %v318
        %v671 = vunpack.c.l.b16 %v319
        %v672 = vunpack.c.l.b16 %v320
        %v673 = vunpack.c.l.b16 %v321
        %v674 = vunpack.c.l.b16 %v322
        %v675 = vunpack.c.l.b16 %v323
        %v676 = vunpack.c.l.b16 %v324
        %v677 = vunpack.c.l.b16 %v325
        %v678 = vunpack.c.l.b16 %v326
        %v679 = vunpack.c.l.b16 %v327
        %v680 = vunpack.c.l.b16 %v328
        %v681 = vunpack.c.l.b16 %v329
        %v682 = vunpack.c.l.b16 %v330
        %v683 = vunpack.c.l.b16 %v331
        %v684 = vunpack.c.l.b16 %v332
        %v685 = vunpack.c.l.b16 %v333
        %v686 = vunpack.c.l.b16 %v334
        %v687 = vunpack.c.l.b16 %v335
        %v688 = vunpack.c.l.b16 %v336
        %v689 = vunpack.c.l.b16 %v337
        %v690 = vunpack.c.l.b16 %v338
        %v691 = vunpack.c.l.b16 %v339
        %v692 = vunpack.c.l.b16 %v340
        %v693 = vpack.c.b16 %v646, %v645
        %v694 = vpack.c.b16 %v648, %v647
        %v695 = vpack.c.b16 %v650, %v649
        %v696 = vpack.c.b16 %v652, %v651
        %v697 = vpack.c.b16 %v654, %v653
        %v698 = vpack.c.b16 %v656, %v655
        %v699 = vpack.c.b16 %v658, %v657
        %v700 = vpack.c.b16 %v660, %v659
        %v701 = vpack.c.b16 %v662, %v661
        %v702 = vpack.c.b16 %v664, %v663
        %v703 = vpack.c.b16 %v666, %v665
        %v704 = vpack.c.b16 %v668, %v667
        %v705 = vpack.c.b16 %v670, %v669
        %v706 = vpack.c.b16 %v672, %v671
        %v707 = vpack.c.b16 %v674, %v673
        %v708 = vpack.c.b16 %v676, %v675
        %v709 = vpack.c.b16 %v678, %v677
        %v710 = vpack.c.b16 %v680, %v679
        %v711 = vpack.c.b16 %v682, %v681
        %v712 = vpack.c.b16 %v684, %v683
        %v713 = vpack.c.b16 %v686, %v685
        %v714 = vpack.c.b16 %v688, %v687
        %v715 = vpack.c.b16 %v690, %v689
        %v716 = vpack.c.b16 %v692, %v691
        %741 = vmatprep.subr.bf16.mxu0 0
        %742 = vmatpush1.bf16.msra.mxu0 %v693
        %743 = vmatprep.subr.bf16.mxu0 0
        %744 = vmatpush1.bf16.msra.mxu0 %v694
        %745 = vmatprep.subr.bf16.mxu0 0
        %746 = vmatpush1.bf16.msra.mxu0 %v695
        %747 = vmatprep.subr.bf16.mxu0 0
        %748 = vmatpush1.bf16.msra.mxu0 %v696
        %749 = vmatprep.subr.bf16.mxu0 0
        %750 = vmatpush1.bf16.msra.mxu0 %v697
        %751 = vmatprep.subr.bf16.mxu0 0
        %752 = vmatpush1.bf16.msra.mxu0 %v698
        %753 = vmatprep.subr.bf16.mxu0 0
        %754 = vmatpush1.bf16.msra.mxu0 %v699
        %755 = vmatprep.subr.bf16.mxu0 0
        %756 = vmatpush1.bf16.msra.mxu0 %v700
        %757 = vmatprep.subr.bf16.mxu0 0
        %758 = vmatpush1.bf16.msra.mxu0 %v701
        %759 = vmatprep.subr.bf16.mxu0 0
        %760 = vmatpush1.bf16.msra.mxu0 %v702
        %761 = vmatprep.subr.bf16.mxu0 0
        %762 = vmatpush1.bf16.msra.mxu0 %v703
        %763 = vmatprep.subr.bf16.mxu0 0
        %764 = vmatpush1.bf16.msra.mxu0 %v704
        %765 = vmatprep.subr.bf16.mxu0 0
        %766 = vmatpush1.bf16.msra.mxu0 %v705
        %767 = vmatprep.subr.bf16.mxu0 0
        %768 = vmatpush1.bf16.msra.mxu0 %v706
        %769 = vmatprep.subr.bf16.mxu0 0
        %770 = vmatpush1.bf16.msra.mxu0 %v707
        %771 = vmatprep.subr.bf16.mxu0 0
        %772 = vmatpush1.bf16.msra.mxu0 %v708
        %773 = vmatprep.mubr.bf16.mxu0 %v502
        %774 = vmatmul.mubr.bf16.gmra.mrb[0].mxu0 %v501
        %v775 = vpop.f32.mrb[0].mxu0
        %v776 = vadd.f32 0.0, %v775
        %v777 = vpop.f32.mrb[0].mxu0
        %v778 = vpop.f32.mrb[0].mxu0
        %v779 = vadd.f32 0.0, %v778
        %v780 = vpop.f32.mrb[0].mxu0
        %781 = vmatprep.mubr.bf16.mxu0 %v505
        %782 = vmatmul.mubr.bf16.gmra.mrb[0].mxu0 %v504
        %v783 = vpop.f32.mrb[0].mxu0
        %v784 = vadd.f32 0.0, %v783
        %v785 = vpop.f32.mrb[0].mxu0
        %v786 = vpop.f32.mrb[0].mxu0
        %v787 = vadd.f32 0.0, %v786
        %v788 = vpop.f32.mrb[0].mxu0
        %789 = vmatprep.mubr.bf16.mxu0 %v508
        %790 = vmatmul.mubr.bf16.gmra.mrb[0].mxu0 %v507
        %v791 = vpop.f32.mrb[0].mxu0
        %v792 = vadd.f32 0.0, %v791
        %v793 = vpop.f32.mrb[0].mxu0
        %v794 = vpop.f32.mrb[0].mxu0
        %v795 = vadd.f32 0.0, %v794
        %v796 = vpop.f32.mrb[0].mxu0
        %797 = vmatprep.mubr.bf16.mxu0 %v511
        %798 = vmatmul.mubr.bf16.gmra.mrb[0].mxu0 %v510
        %v799 = vpop.f32.mrb[0].mxu0
        %v800 = vadd.f32 0.0, %v799
        %v801 = vpop.f32.mrb[0].mxu0
        %v802 = vpop.f32.mrb[0].mxu0
        %v803 = vadd.f32 0.0, %v802
        %v804 = vpop.f32.mrb[0].mxu0
        %805 = vmatprep.mubr.bf16.mxu0 %v514
        %806 = vmatmul.mubr.bf16.gmra.mrb[0].mxu0 %v513
        %v807 = vpop.f32.mrb[0].mxu0
        %v808 = vadd.f32 0.0, %v807
        %v809 = vpop.f32.mrb[0].mxu0
        %v810 = vpop.f32.mrb[0].mxu0
        %v811 = vadd.f32 0.0, %v810
        %v812 = vpop.f32.mrb[0].mxu0
        %813 = vmatprep.mubr.bf16.mxu0 %v517
        %814 = vmatmul.mubr.bf16.gmra.mrb[0].mxu0 %v516
        %v815 = vpop.f32.mrb[0].mxu0
        %v816 = vadd.f32 0.0, %v815
        %v817 = vpop.f32.mrb[0].mxu0
        %v818 = vpop.f32.mrb[0].mxu0
        %v819 = vadd.f32 0.0, %v818
        %v820 = vpop.f32.mrb[0].mxu0
        %821 = vmatprep.mubr.bf16.mxu0 %v520
        %822 = vmatmul.mubr.bf16.gmra.mrb[0].mxu0 %v519
        %v823 = vpop.f32.mrb[0].mxu0
        %v824 = vadd.f32 0.0, %v823
        %v825 = vpop.f32.mrb[0].mxu0
        %v826 = vpop.f32.mrb[0].mxu0
        %v827 = vadd.f32 0.0, %v826
        %v828 = vpop.f32.mrb[0].mxu0
        %829 = vmatprep.mubr.bf16.mxu0 %v523
        %830 = vmatmul.mubr.bf16.gmra.mrb[0].mxu0 %v522
        %v831 = vpop.f32.mrb[0].mxu0
        %v832 = vadd.f32 0.0, %v831
        %v833 = vpop.f32.mrb[0].mxu0
        %v834 = vpop.f32.mrb[0].mxu0
        %v835 = vadd.f32 0.0, %v834
        %v836 = vpop.f32.mrb[0].mxu0
        %837 = vmatprep.mubr.bf16.mxu0 %v526
        %838 = vmatmul.mubr.bf16.gmra.mrb[0].mxu0 %v525
        %v839 = vpop.f32.mrb[0].mxu0
        %v840 = vadd.f32 0.0, %v839
        %v841 = vpop.f32.mrb[0].mxu0
        %v842 = vpop.f32.mrb[0].mxu0
        %v843 = vadd.f32 0.0, %v842
        %v844 = vpop.f32.mrb[0].mxu0
        %845 = vmatprep.mubr.bf16.mxu0 %v529
        %846 = vmatmul.mubr.bf16.gmra.mrb[0].mxu0 %v528
        %v847 = vpop.f32.mrb[0].mxu0
        %v848 = vadd.f32 0.0, %v847
        %v849 = vpop.f32.mrb[0].mxu0
        %v850 = vpop.f32.mrb[0].mxu0
        %v851 = vadd.f32 0.0, %v850
        %v852 = vpop.f32.mrb[0].mxu0
        %853 = vmatprep.mubr.bf16.mxu0 %v532
        %854 = vmatmul.mubr.bf16.gmra.mrb[0].mxu0 %v531
        %v855 = vpop.f32.mrb[0].mxu0
        %v856 = vadd.f32 0.0, %v855
        %v857 = vpop.f32.mrb[0].mxu0
        %v858 = vpop.f32.mrb[0].mxu0
        %v859 = vadd.f32 0.0, %v858
        %v860 = vpop.f32.mrb[0].mxu0
        %861 = vmatprep.mubr.bf16.mxu0 %v535
        %862 = vmatmul.mubr.bf16.gmra.mrb[0].mxu0 %v534
        %v863 = vpop.f32.mrb[0].mxu0
        %v864 = vadd.f32 0.0, %v863
        %v865 = vpop.f32.mrb[0].mxu0
        %v866 = vpop.f32.mrb[0].mxu0
        %v867 = vadd.f32 0.0, %v866
        %v868 = vpop.f32.mrb[0].mxu0
        %869 = vmatprep.mubr.bf16.mxu0 %v538
        %870 = vmatmul.mubr.bf16.gmra.mrb[0].mxu0 %v537
        %v871 = vpop.f32.mrb[0].mxu0
        %v872 = vadd.f32 0.0, %v871
        %v873 = vpop.f32.mrb[0].mxu0
        %v874 = vpop.f32.mrb[0].mxu0
        %v875 = vadd.f32 0.0, %v874
        %v876 = vpop.f32.mrb[0].mxu0
        %877 = vmatprep.mubr.bf16.mxu0 %v541
        %878 = vmatmul.mubr.bf16.gmra.mrb[0].mxu0 %v540
        %v879 = vpop.f32.mrb[0].mxu0
        %v880 = vadd.f32 0.0, %v879
        %v881 = vpop.f32.mrb[0].mxu0
        %v882 = vpop.f32.mrb[0].mxu0
        %v883 = vadd.f32 0.0, %v882
        %v884 = vpop.f32.mrb[0].mxu0
        %885 = vmatprep.mubr.bf16.mxu0 %v544
        %886 = vmatmul.mubr.bf16.gmra.mrb[0].mxu0 %v543
        %v887 = vpop.f32.mrb[0].mxu0
        %v888 = vadd.f32 0.0, %v887
        %v889 = vpop.f32.mrb[0].mxu0
        %v890 = vpop.f32.mrb[0].mxu0
        %v891 = vadd.f32 0.0, %v890
        %v892 = vpop.f32.mrb[0].mxu0
        %893 = vmatprep.mubr.bf16.mxu0 %v547
        %894 = vmatmul.mubr.bf16.gmra.mrb[0].mxu0 %v546
        %v895 = vpop.f32.mrb[0].mxu0
        %v896 = vadd.f32 0.0, %v895
        %v897 = vpop.f32.mrb[0].mxu0
        %v898 = vpop.f32.mrb[0].mxu0
        %v899 = vadd.f32 0.0, %v898
        %v900 = vpop.f32.mrb[0].mxu0
        %901 = vdwg.mxu0
        %902 = vmatprep.subr.bf16.mxu0 0
        %903 = vmatpush1.bf16.msra.mxu0 %v709
        %904 = vmatprep.subr.bf16.mxu0 0
        %905 = vmatpush1.bf16.msra.mxu0 %v710
        %906 = vmatprep.subr.bf16.mxu0 0
        %907 = vmatpush1.bf16.msra.mxu0 %v711
        %908 = vmatprep.subr.bf16.mxu0 0
        %909 = vmatpush1.bf16.msra.mxu0 %v712
        %910 = vmatprep.subr.bf16.mxu0 0
        %911 = vmatpush1.bf16.msra.mxu0 %v713
        %912 = vmatprep.subr.bf16.mxu0 0
        %913 = vmatpush1.bf16.msra.mxu0 %v714
        %914 = vmatprep.subr.bf16.mxu0 0
        %915 = vmatpush1.bf16.msra.mxu0 %v715
        %916 = vmatprep.subr.bf16.mxu0 0
        %917 = vmatpush1.bf16.msra.mxu0 %v716
        %918 = vmatprep.subr.bf16.mxu0 0
        %919 = vmatpush1.bf16.msra.mxu0 0
        %920 = vmatprep.subr.bf16.mxu0 0
        %921 = vmatpush1.bf16.msra.mxu0 0
        %922 = vmatprep.subr.bf16.mxu0 0
        %923 = vmatpush1.bf16.msra.mxu0 0
        %924 = vmatprep.subr.bf16.mxu0 0
        %925 = vmatpush1.bf16.msra.mxu0 0
        %926 = vmatprep.subr.bf16.mxu0 0
        %927 = vmatpush1.bf16.msra.mxu0 0
        %928 = vmatprep.subr.bf16.mxu0 0
        %929 = vmatpush1.bf16.msra.mxu0 0
        %930 = vmatprep.subr.bf16.mxu0 0
        %931 = vmatpush1.bf16.msra.mxu0 0
        %932 = vmatprep.subr.bf16.mxu0 0
        %933 = vmatpush1.bf16.msra.mxu0 0
        %934 = vmatprep.mubr.bf16.mxu0 0
        %935 = vmatmul.mubr.bf16.gmra.mrb[0].mxu0 %v503
        %v936 = vpop.f32.mrb[0].mxu0
        %v937 = vadd.f32 %v776, %v936
        %v938 = vpop.f32.mrb[0].mxu0
        %v939 = vpop.f32.mrb[0].mxu0
        %v940 = vadd.f32 %v779, %v939
        %v941 = vpop.f32.mrb[0].mxu0
        %942 = vmatprep.mubr.bf16.mxu0 0
        %943 = vmatmul.mubr.bf16.gmra.mrb[0].mxu0 %v506
        %v944 = vpop.f32.mrb[0].mxu0
        %v945 = vadd.f32 %v784, %v944
        %v946 = vpop.f32.mrb[0].mxu0
        %v947 = vpop.f32.mrb[0].mxu0
        %v948 = vadd.f32 %v787, %v947
        %v949 = vpop.f32.mrb[0].mxu0
        %950 = vmatprep.mubr.bf16.mxu0 0
        %951 = vmatmul.mubr.bf16.gmra.mrb[0].mxu0 %v509
        %v952 = vpop.f32.mrb[0].mxu0
        %v953 = vadd.f32 %v792, %v952
        %v954 = vpop.f32.mrb[0].mxu0
        %v955 = vpop.f32.mrb[0].mxu0
        %v956 = vadd.f32 %v795, %v955
        %v957 = vpop.f32.mrb[0].mxu0
        %958 = vmatprep.mubr.bf16.mxu0 0
        %959 = vmatmul.mubr.bf16.gmra.mrb[0].mxu0 %v512
        %v960 = vpop.f32.mrb[0].mxu0
        %v961 = vadd.f32 %v800, %v960
        %v962 = vpop.f32.mrb[0].mxu0
        %v963 = vpop.f32.mrb[0].mxu0
        %v964 = vadd.f32 %v803, %v963
        %v965 = vpop.f32.mrb[0].mxu0
        %966 = vmatprep.mubr.bf16.mxu0 0
        %967 = vmatmul.mubr.bf16.gmra.mrb[0].mxu0 %v515
        %v968 = vpop.f32.mrb[0].mxu0
        %v969 = vadd.f32 %v808, %v968
        %v970 = vpop.f32.mrb[0].mxu0
        %v971 = vpop.f32.mrb[0].mxu0
        %v972 = vadd.f32 %v811, %v971
        %v973 = vpop.f32.mrb[0].mxu0
        %974 = vmatprep.mubr.bf16.mxu0 0
        %975 = vmatmul.mubr.bf16.gmra.mrb[0].mxu0 %v518
        %v976 = vpop.f32.mrb[0].mxu0
        %v977 = vadd.f32 %v816, %v976
        %v978 = vpop.f32.mrb[0].mxu0
        %v979 = vpop.f32.mrb[0].mxu0
        %v980 = vadd.f32 %v819, %v979
        %v981 = vpop.f32.mrb[0].mxu0
        %982 = vmatprep.mubr.bf16.mxu0 0
        %983 = vmatmul.mubr.bf16.gmra.mrb[0].mxu0 %v521
        %v984 = vpop.f32.mrb[0].mxu0
        %v985 = vadd.f32 %v824, %v984
        %v986 = vpop.f32.mrb[0].mxu0
        %v987 = vpop.f32.mrb[0].mxu0
        %v988 = vadd.f32 %v827, %v987
        %v989 = vpop.f32.mrb[0].mxu0
        %990 = vmatprep.mubr.bf16.mxu0 0
        %991 = vmatmul.mubr.bf16.gmra.mrb[0].mxu0 %v524
        %v992 = vpop.f32.mrb[0].mxu0
        %v993 = vadd.f32 %v832, %v992
        %v994 = vpop.f32.mrb[0].mxu0
        %v995 = vpop.f32.mrb[0].mxu0
        %v996 = vadd.f32 %v835, %v995
        %v997 = vpop.f32.mrb[0].mxu0
        %998 = vmatprep.mubr.bf16.mxu0 0
        %999 = vmatmul.mubr.bf16.gmra.mrb[0].mxu0 %v527
        %v1000 = vpop.f32.mrb[0].mxu0
        %v1001 = vadd.f32 %v840, %v1000
        %v1002 = vpop.f32.mrb[0].mxu0
        %v1003 = vpop.f32.mrb[0].mxu0
        %v1004 = vadd.f32 %v843, %v1003
        %v1005 = vpop.f32.mrb[0].mxu0
        %1006 = vmatprep.mubr.bf16.mxu0 0
        %1007 = vmatmul.mubr.bf16.gmra.mrb[0].mxu0 %v530
        %v1008 = vpop.f32.mrb[0].mxu0
        %v1009 = vadd.f32 %v848, %v1008
        %v1010 = vpop.f32.mrb[0].mxu0
        %v1011 = vpop.f32.mrb[0].mxu0
        %v1012 = vadd.f32 %v851, %v1011
        %v1013 = vpop.f32.mrb[0].mxu0
        %1014 = vmatprep.mubr.bf16.mxu0 0
        %1015 = vmatmul.mubr.bf16.gmra.mrb[0].mxu0 %v533
        %v1016 = vpop.f32.mrb[0].mxu0
        %v1017 = vadd.f32 %v856, %v1016
        %v1018 = vpop.f32.mrb[0].mxu0
        %v1019 = vpop.f32.mrb[0].mxu0
        %v1020 = vadd.f32 %v859, %v1019
        %v1021 = vpop.f32.mrb[0].mxu0
        %1022 = vmatprep.mubr.bf16.mxu0 0
        %1023 = vmatmul.mubr.bf16.gmra.mrb[0].mxu0 %v536
        %v1024 = vpop.f32.mrb[0].mxu0
        %v1025 = vadd.f32 %v864, %v1024
        %v1026 = vpop.f32.mrb[0].mxu0
        %v1027 = vpop.f32.mrb[0].mxu0
        %v1028 = vadd.f32 %v867, %v1027
        %v1029 = vpop.f32.mrb[0].mxu0
        %1030 = vmatprep.mubr.bf16.mxu0 0
        %1031 = vmatmul.mubr.bf16.gmra.mrb[0].mxu0 %v539
        %v1032 = vpop.f32.mrb[0].mxu0
        %v1033 = vadd.f32 %v872, %v1032
        %v1034 = vpop.f32.mrb[0].mxu0
        %v1035 = vpop.f32.mrb[0].mxu0
        %v1036 = vadd.f32 %v875, %v1035
        %v1037 = vpop.f32.mrb[0].mxu0
        %1038 = vmatprep.mubr.bf16.mxu0 0
        %1039 = vmatmul.mubr.bf16.gmra.mrb[0].mxu0 %v542
        %v1040 = vpop.f32.mrb[0].mxu0
        %v1041 = vadd.f32 %v880, %v1040
        %v1042 = vpop.f32.mrb[0].mxu0
        %v1043 = vpop.f32.mrb[0].mxu0
        %v1044 = vadd.f32 %v883, %v1043
        %v1045 = vpop.f32.mrb[0].mxu0
        %1046 = vmatprep.mubr.bf16.mxu0 0
        %1047 = vmatmul.mubr.bf16.gmra.mrb[0].mxu0 %v545
        %v1048 = vpop.f32.mrb[0].mxu0
        %v1049 = vadd.f32 %v888, %v1048
        %v1050 = vpop.f32.mrb[0].mxu0
        %v1051 = vpop.f32.mrb[0].mxu0
        %v1052 = vadd.f32 %v891, %v1051
        %v1053 = vpop.f32.mrb[0].mxu0
        %1054 = vmatprep.mubr.bf16.mxu0 0
        %1055 = vmatmul.mubr.bf16.gmra.mrb[0].mxu0 %v548
        %v1056 = vpop.f32.mrb[0].mxu0
        %v1057 = vadd.f32 %v896, %v1056
        %v1058 = vpop.f32.mrb[0].mxu0
        %v1059 = vpop.f32.mrb[0].mxu0
        %v1060 = vadd.f32 %v899, %v1059
        %v1061 = vpop.f32.mrb[0].mxu0
        %1062 = vdwg.mxu0
        %1063 = vst [vmem:[#allocation2] sm:$0xff] %v937
        %1064 = vst [vmem:[#allocation2 + $0x8] sm:$0xff] %v940
        %1065 = vst [vmem:[#allocation2 + $0x10] sm:$0xff] %v945
        %1066 = vst [vmem:[#allocation2 + $0x18] sm:$0xff] %v948
        %1067 = vst [vmem:[#allocation2 + $0x20] sm:$0xff] %v953
        %1068 = vst [vmem:[#allocation2 + $0x28] sm:$0xff] %v956
        %1069 = vst [vmem:[#allocation2 + $0x30] sm:$0xff] %v961
        %1070 = vst [vmem:[#allocation2 + $0x38] sm:$0xff] %v964
        %1071 = vst [vmem:[#allocation2 + $0x40] sm:$0xff] %v969
        %1072 = vst [vmem:[#allocation2 + $0x48] sm:$0xff] %v972
        %1073 = vst [vmem:[#allocation2 + $0x50] sm:$0xff] %v977
        %1074 = vst [vmem:[#allocation2 + $0x58] sm:$0xff] %v980
        %1075 = vst [vmem:[#allocation2 + $0x60] sm:$0xff] %v985
        %1076 = vst [vmem:[#allocation2 + $0x68] sm:$0xff] %v988
        %1077 = vst [vmem:[#allocation2 + $0x70] sm:$0xff] %v993
        %1078 = vst [vmem:[#allocation2 + $0x78] sm:$0xff] %v996
        %1079 = vst [vmem:[#allocation2 + $0x80] sm:$0xff] %v1001
        %1080 = vst [vmem:[#allocation2 + $0x88] sm:$0xff] %v1004
        %1081 = vst [vmem:[#allocation2 + $0x90] sm:$0xff] %v1009
        %1082 = vst [vmem:[#allocation2 + $0x98] sm:$0xff] %v1012
        %1083 = vst [vmem:[#allocation2 + $0xa0] sm:$0xff] %v1017
        %1084 = vst [vmem:[#allocation2 + $0xa8] sm:$0xff] %v1020
        %1085 = vst [vmem:[#allocation2 + $0xb0] sm:$0xff] %v1025
        %1086 = vst [vmem:[#allocation2 + $0xb8] sm:$0xff] %v1028
        %1087 = vst [vmem:[#allocation2 + $0xc0] sm:$0xff] %v1033
        %1088 = vst [vmem:[#allocation2 + $0xc8] sm:$0xff] %v1036
        %1089 = vst [vmem:[#allocation2 + $0xd0] sm:$0xff] %v1041
        %1090 = vst [vmem:[#allocation2 + $0xd8] sm:$0xff] %v1044
        %1091 = vst [vmem:[#allocation2 + $0xe0] sm:$0xff] %v1049
        %1092 = vst [vmem:[#allocation2 + $0xe8] sm:$0xff] %v1052
        %1093 = vst [vmem:[#allocation2 + $0xf0] sm:$0xff] %v1057
        %1094 = vst [vmem:[#allocation2 + $0xf8] sm:$0xff] %v1060
        %s1095 = sadd.s32 %s225, 1
        %s1096 = smul.u32 %s1095, 6
        %s1097 = smul.addr %s1096, 4
        %s1098 = scalar_lea.vmem %s215, %s1097
        %v1099 = vld [vmem:[%s1098] sm:$0xff]
        %v1100 = vld [vmem:[%s1098 + $0x8] sm:$0xf]
        %v1101 = vld [vmem:[%s1098 + $0xc] sm:$0xff]
        %v1102 = vld [vmem:[%s1098 + $0x14] sm:$0xf]
        %v1103 = vld [vmem:[%s1098 + $0x18] sm:$0xff]
        %v1104 = vld [vmem:[%s1098 + $0x20] sm:$0xf]
        %v1105 = vld [vmem:[%s1098 + $0x24] sm:$0xff]
        %v1106 = vld [vmem:[%s1098 + $0x2c] sm:$0xf]
        %v1107 = vld [vmem:[%s1098 + $0x30] sm:$0xff]
        %v1108 = vld [vmem:[%s1098 + $0x38] sm:$0xf]
        %v1109 = vld [vmem:[%s1098 + $0x3c] sm:$0xff]
        %v1110 = vld [vmem:[%s1098 + $0x44] sm:$0xf]
        %v1111 = vld [vmem:[%s1098 + $0x48] sm:$0xff]
        %v1112 = vld [vmem:[%s1098 + $0x50] sm:$0xf]
        %v1113 = vld [vmem:[%s1098 + $0x54] sm:$0xff]
        %v1114 = vld [vmem:[%s1098 + $0x5c] sm:$0xf]
        %v1115 = vld [vmem:[%s1098 + $0x60] sm:$0xff]
        %v1116 = vld [vmem:[%s1098 + $0x68] sm:$0xf]
        %v1117 = vld [vmem:[%s1098 + $0x6c] sm:$0xff]
        %v1118 = vld [vmem:[%s1098 + $0x74] sm:$0xf]
        %v1119 = vld [vmem:[%s1098 + $0x78] sm:$0xff]
        %v1120 = vld [vmem:[%s1098 + $0x80] sm:$0xf]
        %v1121 = vld [vmem:[%s1098 + $0x84] sm:$0xff]
        %v1122 = vld [vmem:[%s1098 + $0x8c] sm:$0xf]
        %v1123 = vld [vmem:[%s1098 + $0x90] sm:$0xff]
        %v1124 = vld [vmem:[%s1098 + $0x98] sm:$0xf]
        %v1125 = vld [vmem:[%s1098 + $0x9c] sm:$0xff]
        %v1126 = vld [vmem:[%s1098 + $0xa4] sm:$0xf]
        %v1127 = vld [vmem:[%s1098 + $0xa8] sm:$0xff]
        %v1128 = vld [vmem:[%s1098 + $0xb0] sm:$0xf]
        %v1129 = vld [vmem:[%s1098 + $0xb4] sm:$0xff]
        %v1130 = vld [vmem:[%s1098 + $0xbc] sm:$0xf]
        %v1131 = vld [vmem:[%s1098 + $0xc0] sm:$0xff]
        %v1132 = vld [vmem:[%s1098 + $0xc8] sm:$0xf]
        %v1133 = vld [vmem:[%s1098 + $0xcc] sm:$0xff]
        %v1134 = vld [vmem:[%s1098 + $0xd4] sm:$0xf]
        %v1135 = vld [vmem:[%s1098 + $0xd8] sm:$0xff]
        %v1136 = vld [vmem:[%s1098 + $0xe0] sm:$0xf]
        %v1137 = vld [vmem:[%s1098 + $0xe4] sm:$0xff]
        %v1138 = vld [vmem:[%s1098 + $0xec] sm:$0xf]
        %v1139 = vld [vmem:[%s1098 + $0xf0] sm:$0xff]
        %v1140 = vld [vmem:[%s1098 + $0xf8] sm:$0xf]
        %v1141 = vld [vmem:[%s1098 + $0xfc] sm:$0xff]
        %v1142 = vld [vmem:[%s1098 + $0x104] sm:$0xf]
        %v1143 = vld [vmem:[%s1098 + $0x108] sm:$0xff]
        %v1144 = vld [vmem:[%s1098 + $0x110] sm:$0xf]
        %v1145 = vld [vmem:[%s1098 + $0x114] sm:$0xff]
        %v1146 = vld [vmem:[%s1098 + $0x11c] sm:$0xf]
        %v1147 = vld [vmem:[%s1098 + $0x120] sm:$0xff]
        %v1148 = vld [vmem:[%s1098 + $0x128] sm:$0xf]
        %v1149 = vld [vmem:[%s1098 + $0x12c] sm:$0xff]
        %v1150 = vld [vmem:[%s1098 + $0x134] sm:$0xf]
        %v1151 = vld [vmem:[%s1098 + $0x138] sm:$0xff]
        %v1152 = vld [vmem:[%s1098 + $0x140] sm:$0xf]
        %v1153 = vld [vmem:[%s1098 + $0x144] sm:$0xff]
        %v1154 = vld [vmem:[%s1098 + $0x14c] sm:$0xf]
        %v1155 = vld [vmem:[%s1098 + $0x150] sm:$0xff]
        %v1156 = vld [vmem:[%s1098 + $0x158] sm:$0xf]
        %v1157 = vld [vmem:[%s1098 + $0x15c] sm:$0xff]
        %v1158 = vld [vmem:[%s1098 + $0x164] sm:$0xf]
        %v1159 = vld [vmem:[%s1098 + $0x168] sm:$0xff]
        %v1160 = vld [vmem:[%s1098 + $0x170] sm:$0xf]
        %v1161 = vld [vmem:[%s1098 + $0x174] sm:$0xff]
        %v1162 = vld [vmem:[%s1098 + $0x17c] sm:$0xf]
        %s1163 = scalar_lea.vmem %s219, 192
        %v1164 = vld [vmem:[%s1163] sm:$0xf]
        %v1165 = vld [vmem:[%s1163 + $0x4] sm:$0xf]
        %v1166 = vld [vmem:[%s1163 + $0x8] sm:$0xf]
        %v1167 = vld [vmem:[%s1163 + $0xc] sm:$0xf]
        %v1168 = vld [vmem:[%s1163 + $0x10] sm:$0xf]
        %v1169 = vld [vmem:[%s1163 + $0x14] sm:$0xf]
        %v1170 = vld [vmem:[%s1163 + $0x18] sm:$0xf]
        %v1171 = vld [vmem:[%s1163 + $0x1c] sm:$0xf]
        %v1172 = vld [vmem:[%s1163 + $0x20] sm:$0xf]
        %v1173 = vld [vmem:[%s1163 + $0x24] sm:$0xf]
        %v1174 = vld [vmem:[%s1163 + $0x28] sm:$0xf]
        %v1175 = vld [vmem:[%s1163 + $0x2c] sm:$0xf]
        %v1176 = vld [vmem:[%s1163 + $0x30] sm:$0xf]
        %v1177 = vld [vmem:[%s1163 + $0x34] sm:$0xf]
        %v1178 = vld [vmem:[%s1163 + $0x38] sm:$0xf]
        %v1179 = vld [vmem:[%s1163 + $0x3c] sm:$0xf]
        %v1180 = vld [vmem:[%s1163 + $0x40] sm:$0xf]
        %v1181 = vld [vmem:[%s1163 + $0x44] sm:$0xf]
        %v1182 = vld [vmem:[%s1163 + $0x48] sm:$0xf]
        %v1183 = vld [vmem:[%s1163 + $0x4c] sm:$0xf]
        %v1184 = vld [vmem:[%s1163 + $0x50] sm:$0xf]
        %v1185 = vld [vmem:[%s1163 + $0x54] sm:$0xf]
        %v1186 = vld [vmem:[%s1163 + $0x58] sm:$0xf]
        %v1187 = vld [vmem:[%s1163 + $0x5c] sm:$0xf]
        %v1188 = vld [vmem:[%s1163 + $0x60] sm:$0xf]
        %v1189 = vld [vmem:[%s1163 + $0x64] sm:$0xf]
        %v1190 = vld [vmem:[%s1163 + $0x68] sm:$0xf]
        %v1191 = vld [vmem:[%s1163 + $0x6c] sm:$0xf]
        %v1192 = vld [vmem:[%s1163 + $0x70] sm:$0xf]
        %v1193 = vld [vmem:[%s1163 + $0x74] sm:$0xf]
        %v1194 = vld [vmem:[%s1163 + $0x78] sm:$0xf]
        %v1195 = vld [vmem:[%s1163 + $0x7c] sm:$0xf]
        %v1196 = vld [vmem:[%s1163 + $0x80] sm:$0xf]
        %v1197 = vld [vmem:[%s1163 + $0x84] sm:$0xf]
        %v1198 = vld [vmem:[%s1163 + $0x88] sm:$0xf]
        %v1199 = vld [vmem:[%s1163 + $0x8c] sm:$0xf]
        %v1200 = vld [vmem:[%s1163 + $0x90] sm:$0xf]
        %v1201 = vld [vmem:[%s1163 + $0x94] sm:$0xf]
        %v1202 = vld [vmem:[%s1163 + $0x98] sm:$0xf]
        %v1203 = vld [vmem:[%s1163 + $0x9c] sm:$0xf]
        %v1204 = vld [vmem:[%s1163 + $0xa0] sm:$0xf]
        %v1205 = vld [vmem:[%s1163 + $0xa4] sm:$0xf]
        %v1206 = vld [vmem:[%s1163 + $0xa8] sm:$0xf]
        %v1207 = vld [vmem:[%s1163 + $0xac] sm:$0xf]
        %v1208 = vld [vmem:[%s1163 + $0xb0] sm:$0xf]
        %v1209 = vld [vmem:[%s1163 + $0xb4] sm:$0xf]
        %v1210 = vld [vmem:[%s1163 + $0xb8] sm:$0xf]
        %v1211 = vld [vmem:[%s1163 + $0xbc] sm:$0xf]
        %v1276 = vunpack.c.l.b16 %v1099
        %v1277 = vunpack.c.h.b16 %v1099
        %v1278 = vunpack.c.l.b16 %v1100
        %v1279 = vunpack.c.l.b16 %v1101
        %v1280 = vunpack.c.h.b16 %v1101
        %v1281 = vunpack.c.l.b16 %v1102
        %v1282 = vunpack.c.l.b16 %v1103
        %v1283 = vunpack.c.h.b16 %v1103
        %v1284 = vunpack.c.l.b16 %v1104
        %v1285 = vunpack.c.l.b16 %v1105
        %v1286 = vunpack.c.h.b16 %v1105
        %v1287 = vunpack.c.l.b16 %v1106
        %v1288 = vunpack.c.l.b16 %v1107
        %v1289 = vunpack.c.h.b16 %v1107
        %v1290 = vunpack.c.l.b16 %v1108
        %v1291 = vunpack.c.l.b16 %v1109
        %v1292 = vunpack.c.h.b16 %v1109
        %v1293 = vunpack.c.l.b16 %v1110
        %v1294 = vunpack.c.l.b16 %v1111
        %v1295 = vunpack.c.h.b16 %v1111
        %v1296 = vunpack.c.l.b16 %v1112
        %v1297 = vunpack.c.l.b16 %v1113
        %v1298 = vunpack.c.h.b16 %v1113
        %v1299 = vunpack.c.l.b16 %v1114
        %v1300 = vunpack.c.l.b16 %v1115
        %v1301 = vunpack.c.h.b16 %v1115
        %v1302 = vunpack.c.l.b16 %v1116
        %v1303 = vunpack.c.l.b16 %v1117
        %v1304 = vunpack.c.h.b16 %v1117
        %v1305 = vunpack.c.l.b16 %v1118
        %v1306 = vunpack.c.l.b16 %v1119
        %v1307 = vunpack.c.h.b16 %v1119
        %v1308 = vunpack.c.l.b16 %v1120
        %v1309 = vunpack.c.l.b16 %v1121
        %v1310 = vunpack.c.h.b16 %v1121
        %v1311 = vunpack.c.l.b16 %v1122
        %v1312 = vunpack.c.l.b16 %v1123
        %v1313 = vunpack.c.h.b16 %v1123
        %v1314 = vunpack.c.l.b16 %v1124
        %v1315 = vunpack.c.l.b16 %v1125
        %v1316 = vunpack.c.h.b16 %v1125
        %v1317 = vunpack.c.l.b16 %v1126
        %v1318 = vunpack.c.l.b16 %v1127
        %v1319 = vunpack.c.h.b16 %v1127
        %v1320 = vunpack.c.l.b16 %v1128
        %v1321 = vunpack.c.l.b16 %v1129
        %v1322 = vunpack.c.h.b16 %v1129
        %v1323 = vunpack.c.l.b16 %v1130
        %v1324 = vunpack.c.l.b16 %v1131
        %v1325 = vunpack.c.h.b16 %v1131
        %v1326 = vunpack.c.l.b16 %v1132
        %v1327 = vunpack.c.l.b16 %v1133
        %v1328 = vunpack.c.h.b16 %v1133
        %v1329 = vunpack.c.l.b16 %v1134
        %v1330 = vunpack.c.l.b16 %v1135
        %v1331 = vunpack.c.h.b16 %v1135
        %v1332 = vunpack.c.l.b16 %v1136
        %v1333 = vunpack.c.l.b16 %v1137
        %v1334 = vunpack.c.h.b16 %v1137
        %v1335 = vunpack.c.l.b16 %v1138
        %v1336 = vunpack.c.l.b16 %v1139
        %v1337 = vunpack.c.h.b16 %v1139
        %v1338 = vunpack.c.l.b16 %v1140
        %v1339 = vunpack.c.l.b16 %v1141
        %v1340 = vunpack.c.h.b16 %v1141
        %v1341 = vunpack.c.l.b16 %v1142
        %v1342 = vunpack.c.l.b16 %v1143
        %v1343 = vunpack.c.h.b16 %v1143
        %v1344 = vunpack.c.l.b16 %v1144
        %v1345 = vunpack.c.l.b16 %v1145
        %v1346 = vunpack.c.h.b16 %v1145
        %v1347 = vunpack.c.l.b16 %v1146
        %v1348 = vunpack.c.l.b16 %v1147
        %v1349 = vunpack.c.h.b16 %v1147
        %v1350 = vunpack.c.l.b16 %v1148
        %v1351 = vunpack.c.l.b16 %v1149
        %v1352 = vunpack.c.h.b16 %v1149
        %v1353 = vunpack.c.l.b16 %v1150
        %v1354 = vunpack.c.l.b16 %v1151
        %v1355 = vunpack.c.h.b16 %v1151
        %v1356 = vunpack.c.l.b16 %v1152
        %v1357 = vunpack.c.l.b16 %v1153
        %v1358 = vunpack.c.h.b16 %v1153
        %v1359 = vunpack.c.l.b16 %v1154
        %v1360 = vunpack.c.l.b16 %v1155
        %v1361 = vunpack.c.h.b16 %v1155
        %v1362 = vunpack.c.l.b16 %v1156
        %v1363 = vunpack.c.l.b16 %v1157
        %v1364 = vunpack.c.h.b16 %v1157
        %v1365 = vunpack.c.l.b16 %v1158
        %v1366 = vunpack.c.l.b16 %v1159
        %v1367 = vunpack.c.h.b16 %v1159
        %v1368 = vunpack.c.l.b16 %v1160
        %v1369 = vunpack.c.l.b16 %v1161
        %v1370 = vunpack.c.h.b16 %v1161
        %v1371 = vunpack.c.l.b16 %v1162
        %v1372 = vpack.c.b16 %v1279, %v1276
        %v1373 = vpack.c.b16 %v1280, %v1277
        %v1374 = vpack.c.b16 %v1281, %v1278
        %v1375 = vpack.c.b16 %v1285, %v1282
        %v1376 = vpack.c.b16 %v1286, %v1283
        %v1377 = vpack.c.b16 %v1287, %v1284
        %v1378 = vpack.c.b16 %v1291, %v1288
        %v1379 = vpack.c.b16 %v1292, %v1289
        %v1380 = vpack.c.b16 %v1293, %v1290
        %v1381 = vpack.c.b16 %v1297, %v1294
        %v1382 = vpack.c.b16 %v1298, %v1295
        %v1383 = vpack.c.b16 %v1299, %v1296
        %v1384 = vpack.c.b16 %v1303, %v1300
        %v1385 = vpack.c.b16 %v1304, %v1301
        %v1386 = vpack.c.b16 %v1305, %v1302
        %v1387 = vpack.c.b16 %v1309, %v1306
        %v1388 = vpack.c.b16 %v1310, %v1307
        %v1389 = vpack.c.b16 %v1311, %v1308
        %v1390 = vpack.c.b16 %v1315, %v1312
        %v1391 = vpack.c.b16 %v1316, %v1313
        %v1392 = vpack.c.b16 %v1317, %v1314
        %v1393 = vpack.c.b16 %v1321, %v1318
        %v1394 = vpack.c.b16 %v1322, %v1319
        %v1395 = vpack.c.b16 %v1323, %v1320
        %v1396 = vpack.c.b16 %v1327, %v1324
        %v1397 = vpack.c.b16 %v1328, %v1325
        %v1398 = vpack.c.b16 %v1329, %v1326
        %v1399 = vpack.c.b16 %v1333, %v1330
        %v1400 = vpack.c.b16 %v1334, %v1331
        %v1401 = vpack.c.b16 %v1335, %v1332
        %v1402 = vpack.c.b16 %v1339, %v1336
        %v1403 = vpack.c.b16 %v1340, %v1337
        %v1404 = vpack.c.b16 %v1341, %v1338
        %v1405 = vpack.c.b16 %v1345, %v1342
        %v1406 = vpack.c.b16 %v1346, %v1343
        %v1407 = vpack.c.b16 %v1347, %v1344
        %v1408 = vpack.c.b16 %v1351, %v1348
        %v1409 = vpack.c.b16 %v1352, %v1349
        %v1410 = vpack.c.b16 %v1353, %v1350
        %v1411 = vpack.c.b16 %v1357, %v1354
        %v1412 = vpack.c.b16 %v1358, %v1355
        %v1413 = vpack.c.b16 %v1359, %v1356
        %v1414 = vpack.c.b16 %v1363, %v1360
        %v1415 = vpack.c.b16 %v1364, %v1361
        %v1416 = vpack.c.b16 %v1365, %v1362
        %v1417 = vpack.c.b16 %v1369, %v1366
        %v1418 = vpack.c.b16 %v1370, %v1367
        %v1419 = vpack.c.b16 %v1371, %v1368
        %v1516 = vunpack.c.l.b16 %v1164
        %v1517 = vunpack.c.l.b16 %v1165
        %v1518 = vunpack.c.l.b16 %v1166
        %v1519 = vunpack.c.l.b16 %v1167
        %v1520 = vunpack.c.l.b16 %v1168
        %v1521 = vunpack.c.l.b16 %v1169
        %v1522 = vunpack.c.l.b16 %v1170
        %v1523 = vunpack.c.l.b16 %v1171
        %v1524 = vunpack.c.l.b16 %v1172
        %v1525 = vunpack.c.l.b16 %v1173
        %v1526 = vunpack.c.l.b16 %v1174
        %v1527 = vunpack.c.l.b16 %v1175
        %v1528 = vunpack.c.l.b16 %v1176
        %v1529 = vunpack.c.l.b16 %v1177
        %v1530 = vunpack.c.l.b16 %v1178
        %v1531 = vunpack.c.l.b16 %v1179
        %v1532 = vunpack.c.l.b16 %v1180
        %v1533 = vunpack.c.l.b16 %v1181
        %v1534 = vunpack.c.l.b16 %v1182
        %v1535 = vunpack.c.l.b16 %v1183
        %v1536 = vunpack.c.l.b16 %v1184
        %v1537 = vunpack.c.l.b16 %v1185
        %v1538 = vunpack.c.l.b16 %v1186
        %v1539 = vunpack.c.l.b16 %v1187
        %v1540 = vunpack.c.l.b16 %v1188
        %v1541 = vunpack.c.l.b16 %v1189
        %v1542 = vunpack.c.l.b16 %v1190
        %v1543 = vunpack.c.l.b16 %v1191
        %v1544 = vunpack.c.l.b16 %v1192
        %v1545 = vunpack.c.l.b16 %v1193
        %v1546 = vunpack.c.l.b16 %v1194
        %v1547 = vunpack.c.l.b16 %v1195
        %v1548 = vunpack.c.l.b16 %v1196
        %v1549 = vunpack.c.l.b16 %v1197
        %v1550 = vunpack.c.l.b16 %v1198
        %v1551 = vunpack.c.l.b16 %v1199
        %v1552 = vunpack.c.l.b16 %v1200
        %v1553 = vunpack.c.l.b16 %v1201
        %v1554 = vunpack.c.l.b16 %v1202
        %v1555 = vunpack.c.l.b16 %v1203
        %v1556 = vunpack.c.l.b16 %v1204
        %v1557 = vunpack.c.l.b16 %v1205
        %v1558 = vunpack.c.l.b16 %v1206
        %v1559 = vunpack.c.l.b16 %v1207
        %v1560 = vunpack.c.l.b16 %v1208
        %v1561 = vunpack.c.l.b16 %v1209
        %v1562 = vunpack.c.l.b16 %v1210
        %v1563 = vunpack.c.l.b16 %v1211
        %v1564 = vpack.c.b16 %v1517, %v1516
        %v1565 = vpack.c.b16 %v1519, %v1518
        %v1566 = vpack.c.b16 %v1521, %v1520
        %v1567 = vpack.c.b16 %v1523, %v1522
        %v1568 = vpack.c.b16 %v1525, %v1524
        %v1569 = vpack.c.b16 %v1527, %v1526
        %v1570 = vpack.c.b16 %v1529, %v1528
        %v1571 = vpack.c.b16 %v1531, %v1530
        %v1572 = vpack.c.b16 %v1533, %v1532
        %v1573 = vpack.c.b16 %v1535, %v1534
        %v1574 = vpack.c.b16 %v1537, %v1536
        %v1575 = vpack.c.b16 %v1539, %v1538
        %v1576 = vpack.c.b16 %v1541, %v1540
        %v1577 = vpack.c.b16 %v1543, %v1542
        %v1578 = vpack.c.b16 %v1545, %v1544
        %v1579 = vpack.c.b16 %v1547, %v1546
        %v1580 = vpack.c.b16 %v1549, %v1548
        %v1581 = vpack.c.b16 %v1551, %v1550
        %v1582 = vpack.c.b16 %v1553, %v1552
        %v1583 = vpack.c.b16 %v1555, %v1554
        %v1584 = vpack.c.b16 %v1557, %v1556
        %v1585 = vpack.c.b16 %v1559, %v1558
        %v1586 = vpack.c.b16 %v1561, %v1560
        %v1587 = vpack.c.b16 %v1563, %v1562
        %1612 = vmatprep.subr.bf16.mxu0 0
        %1613 = vmatpush1.bf16.msra.mxu0 %v1564
        %1614 = vmatprep.subr.bf16.mxu0 0
        %1615 = vmatpush1.bf16.msra.mxu0 %v1565
        %1616 = vmatprep.subr.bf16.mxu0 0
        %1617 = vmatpush1.bf16.msra.mxu0 %v1566
        %1618 = vmatprep.subr.bf16.mxu0 0
        %1619 = vmatpush1.bf16.msra.mxu0 %v1567
        %1620 = vmatprep.subr.bf16.mxu0 0
        %1621 = vmatpush1.bf16.msra.mxu0 %v1568
        %1622 = vmatprep.subr.bf16.mxu0 0
        %1623 = vmatpush1.bf16.msra.mxu0 %v1569
        %1624 = vmatprep.subr.bf16.mxu0 0
        %1625 = vmatpush1.bf16.msra.mxu0 %v1570
        %1626 = vmatprep.subr.bf16.mxu0 0
        %1627 = vmatpush1.bf16.msra.mxu0 %v1571
        %1628 = vmatprep.subr.bf16.mxu0 0
        %1629 = vmatpush1.bf16.msra.mxu0 %v1572
        %1630 = vmatprep.subr.bf16.mxu0 0
        %1631 = vmatpush1.bf16.msra.mxu0 %v1573
        %1632 = vmatprep.subr.bf16.mxu0 0
        %1633 = vmatpush1.bf16.msra.mxu0 %v1574
        %1634 = vmatprep.subr.bf16.mxu0 0
        %1635 = vmatpush1.bf16.msra.mxu0 %v1575
        %1636 = vmatprep.subr.bf16.mxu0 0
        %1637 = vmatpush1.bf16.msra.mxu0 %v1576
        %1638 = vmatprep.subr.bf16.mxu0 0
        %1639 = vmatpush1.bf16.msra.mxu0 %v1577
        %1640 = vmatprep.subr.bf16.mxu0 0
        %1641 = vmatpush1.bf16.msra.mxu0 %v1578
        %1642 = vmatprep.subr.bf16.mxu0 0
        %1643 = vmatpush1.bf16.msra.mxu0 %v1579
        %1644 = vmatprep.mubr.bf16.mxu0 %v1373
        %1645 = vmatmul.mubr.bf16.gmra.mrb[0].mxu0 %v1372
        %v1646 = vpop.f32.mrb[0].mxu0
        %v1647 = vadd.f32 0.0, %v1646
        %v1648 = vpop.f32.mrb[0].mxu0
        %v1649 = vpop.f32.mrb[0].mxu0
        %v1650 = vadd.f32 0.0, %v1649
        %v1651 = vpop.f32.mrb[0].mxu0
        %1652 = vmatprep.mubr.bf16.mxu0 %v1376
        %1653 = vmatmul.mubr.bf16.gmra.mrb[0].mxu0 %v1375
        %v1654 = vpop.f32.mrb[0].mxu0
        %v1655 = vadd.f32 0.0, %v1654
        %v1656 = vpop.f32.mrb[0].mxu0
        %v1657 = vpop.f32.mrb[0].mxu0
        %v1658 = vadd.f32 0.0, %v1657
        %v1659 = vpop.f32.mrb[0].mxu0
        %1660 = vmatprep.mubr.bf16.mxu0 %v1379
        %1661 = vmatmul.mubr.bf16.gmra.mrb[0].mxu0 %v1378
        %v1662 = vpop.f32.mrb[0].mxu0
        %v1663 = vadd.f32 0.0, %v1662
        %v1664 = vpop.f32.mrb[0].mxu0
        %v1665 = vpop.f32.mrb[0].mxu0
        %v1666 = vadd.f32 0.0, %v1665
        %v1667 = vpop.f32.mrb[0].mxu0
        %1668 = vmatprep.mubr.bf16.mxu0 %v1382
        %1669 = vmatmul.mubr.bf16.gmra.mrb[0].mxu0 %v1381
        %v1670 = vpop.f32.mrb[0].mxu0
        %v1671 = vadd.f32 0.0, %v1670
        %v1672 = vpop.f32.mrb[0].mxu0
        %v1673 = vpop.f32.mrb[0].mxu0
        %v1674 = vadd.f32 0.0, %v1673
        %v1675 = vpop.f32.mrb[0].mxu0
        %1676 = vmatprep.mubr.bf16.mxu0 %v1385
        %1677 = vmatmul.mubr.bf16.gmra.mrb[0].mxu0 %v1384
        %v1678 = vpop.f32.mrb[0].mxu0
        %v1679 = vadd.f32 0.0, %v1678
        %v1680 = vpop.f32.mrb[0].mxu0
        %v1681 = vpop.f32.mrb[0].mxu0
        %v1682 = vadd.f32 0.0, %v1681
        %v1683 = vpop.f32.mrb[0].mxu0
        %1684 = vmatprep.mubr.bf16.mxu0 %v1388
        %1685 = vmatmul.mubr.bf16.gmra.mrb[0].mxu0 %v1387
        %v1686 = vpop.f32.mrb[0].mxu0
        %v1687 = vadd.f32 0.0, %v1686
        %v1688 = vpop.f32.mrb[0].mxu0
        %v1689 = vpop.f32.mrb[0].mxu0
        %v1690 = vadd.f32 0.0, %v1689
        %v1691 = vpop.f32.mrb[0].mxu0
        %1692 = vmatprep.mubr.bf16.mxu0 %v1391
        %1693 = vmatmul.mubr.bf16.gmra.mrb[0].mxu0 %v1390
        %v1694 = vpop.f32.mrb[0].mxu0
        %v1695 = vadd.f32 0.0, %v1694
        %v1696 = vpop.f32.mrb[0].mxu0
        %v1697 = vpop.f32.mrb[0].mxu0
        %v1698 = vadd.f32 0.0, %v1697
        %v1699 = vpop.f32.mrb[0].mxu0
        %1700 = vmatprep.mubr.bf16.mxu0 %v1394
        %1701 = vmatmul.mubr.bf16.gmra.mrb[0].mxu0 %v1393
        %v1702 = vpop.f32.mrb[0].mxu0
        %v1703 = vadd.f32 0.0, %v1702
        %v1704 = vpop.f32.mrb[0].mxu0
        %v1705 = vpop.f32.mrb[0].mxu0
        %v1706 = vadd.f32 0.0, %v1705
        %v1707 = vpop.f32.mrb[0].mxu0
        %1708 = vmatprep.mubr.bf16.mxu0 %v1397
        %1709 = vmatmul.mubr.bf16.gmra.mrb[0].mxu0 %v1396
        %v1710 = vpop.f32.mrb[0].mxu0
        %v1711 = vadd.f32 0.0, %v1710
        %v1712 = vpop.f32.mrb[0].mxu0
        %v1713 = vpop.f32.mrb[0].mxu0
        %v1714 = vadd.f32 0.0, %v1713
        %v1715 = vpop.f32.mrb[0].mxu0
        %1716 = vmatprep.mubr.bf16.mxu0 %v1400
        %1717 = vmatmul.mubr.bf16.gmra.mrb[0].mxu0 %v1399
        %v1718 = vpop.f32.mrb[0].mxu0
        %v1719 = vadd.f32 0.0, %v1718
        %v1720 = vpop.f32.mrb[0].mxu0
        %v1721 = vpop.f32.mrb[0].mxu0
        %v1722 = vadd.f32 0.0, %v1721
        %v1723 = vpop.f32.mrb[0].mxu0
        %1724 = vmatprep.mubr.bf16.mxu0 %v1403
        %1725 = vmatmul.mubr.bf16.gmra.mrb[0].mxu0 %v1402
        %v1726 = vpop.f32.mrb[0].mxu0
        %v1727 = vadd.f32 0.0, %v1726
        %v1728 = vpop.f32.mrb[0].mxu0
        %v1729 = vpop.f32.mrb[0].mxu0
        %v1730 = vadd.f32 0.0, %v1729
        %v1731 = vpop.f32.mrb[0].mxu0
        %1732 = vmatprep.mubr.bf16.mxu0 %v1406
        %1733 = vmatmul.mubr.bf16.gmra.mrb[0].mxu0 %v1405
        %v1734 = vpop.f32.mrb[0].mxu0
        %v1735 = vadd.f32 0.0, %v1734
        %v1736 = vpop.f32.mrb[0].mxu0
        %v1737 = vpop.f32.mrb[0].mxu0
        %v1738 = vadd.f32 0.0, %v1737
        %v1739 = vpop.f32.mrb[0].mxu0
        %1740 = vmatprep.mubr.bf16.mxu0 %v1409
        %1741 = vmatmul.mubr.bf16.gmra.mrb[0].mxu0 %v1408
        %v1742 = vpop.f32.mrb[0].mxu0
        %v1743 = vadd.f32 0.0, %v1742
        %v1744 = vpop.f32.mrb[0].mxu0
        %v1745 = vpop.f32.mrb[0].mxu0
        %v1746 = vadd.f32 0.0, %v1745
        %v1747 = vpop.f32.mrb[0].mxu0
        %1748 = vmatprep.mubr.bf16.mxu0 %v1412
        %1749 = vmatmul.mubr.bf16.gmra.mrb[0].mxu0 %v1411
        %v1750 = vpop.f32.mrb[0].mxu0
        %v1751 = vadd.f32 0.0, %v1750
        %v1752 = vpop.f32.mrb[0].mxu0
        %v1753 = vpop.f32.mrb[0].mxu0
        %v1754 = vadd.f32 0.0, %v1753
        %v1755 = vpop.f32.mrb[0].mxu0
        %1756 = vmatprep.mubr.bf16.mxu0 %v1415
        %1757 = vmatmul.mubr.bf16.gmra.mrb[0].mxu0 %v1414
        %v1758 = vpop.f32.mrb[0].mxu0
        %v1759 = vadd.f32 0.0, %v1758
        %v1760 = vpop.f32.mrb[0].mxu0
        %v1761 = vpop.f32.mrb[0].mxu0
        %v1762 = vadd.f32 0.0, %v1761
        %v1763 = vpop.f32.mrb[0].mxu0
        %1764 = vmatprep.mubr.bf16.mxu0 %v1418
        %1765 = vmatmul.mubr.bf16.gmra.mrb[0].mxu0 %v1417
        %v1766 = vpop.f32.mrb[0].mxu0
        %v1767 = vadd.f32 0.0, %v1766
        %v1768 = vpop.f32.mrb[0].mxu0
        %v1769 = vpop.f32.mrb[0].mxu0
        %v1770 = vadd.f32 0.0, %v1769
        %v1771 = vpop.f32.mrb[0].mxu0
        %1772 = vdwg.mxu0
        %1773 = vmatprep.subr.bf16.mxu0 0
        %1774 = vmatpush1.bf16.msra.mxu0 %v1580
        %1775 = vmatprep.subr.bf16.mxu0 0
        %1776 = vmatpush1.bf16.msra.mxu0 %v1581
        %1777 = vmatprep.subr.bf16.mxu0 0
        %1778 = vmatpush1.bf16.msra.mxu0 %v1582
        %1779 = vmatprep.subr.bf16.mxu0 0
        %1780 = vmatpush1.bf16.msra.mxu0 %v1583
        %1781 = vmatprep.subr.bf16.mxu0 0
        %1782 = vmatpush1.bf16.msra.mxu0 %v1584
        %1783 = vmatprep.subr.bf16.mxu0 0
        %1784 = vmatpush1.bf16.msra.mxu0 %v1585
        %1785 = vmatprep.subr.bf16.mxu0 0
        %1786 = vmatpush1.bf16.msra.mxu0 %v1586
        %1787 = vmatprep.subr.bf16.mxu0 0
        %1788 = vmatpush1.bf16.msra.mxu0 %v1587
        %1789 = vmatprep.subr.bf16.mxu0 0
        %1790 = vmatpush1.bf16.msra.mxu0 0
        %1791 = vmatprep.subr.bf16.mxu0 0
        %1792 = vmatpush1.bf16.msra.mxu0 0
        %1793 = vmatprep.subr.bf16.mxu0 0
        %1794 = vmatpush1.bf16.msra.mxu0 0
        %1795 = vmatprep.subr.bf16.mxu0 0
        %1796 = vmatpush1.bf16.msra.mxu0 0
        %1797 = vmatprep.subr.bf16.mxu0 0
        %1798 = vmatpush1.bf16.msra.mxu0 0
        %1799 = vmatprep.subr.bf16.mxu0 0
        %1800 = vmatpush1.bf16.msra.mxu0 0
        %1801 = vmatprep.subr.bf16.mxu0 0
        %1802 = vmatpush1.bf16.msra.mxu0 0
        %1803 = vmatprep.subr.bf16.mxu0 0
        %1804 = vmatpush1.bf16.msra.mxu0 0
        %1805 = vmatprep.mubr.bf16.mxu0 0
        %1806 = vmatmul.mubr.bf16.gmra.mrb[0].mxu0 %v1374
        %v1807 = vpop.f32.mrb[0].mxu0
        %v1808 = vadd.f32 %v1647, %v1807
        %v1809 = vpop.f32.mrb[0].mxu0
        %v1810 = vpop.f32.mrb[0].mxu0
        %v1811 = vadd.f32 %v1650, %v1810
        %v1812 = vpop.f32.mrb[0].mxu0
        %1813 = vmatprep.mubr.bf16.mxu0 0
        %1814 = vmatmul.mubr.bf16.gmra.mrb[0].mxu0 %v1377
        %v1815 = vpop.f32.mrb[0].mxu0
        %v1816 = vadd.f32 %v1655, %v1815
        %v1817 = vpop.f32.mrb[0].mxu0
        %v1818 = vpop.f32.mrb[0].mxu0
        %v1819 = vadd.f32 %v1658, %v1818
        %v1820 = vpop.f32.mrb[0].mxu0
        %1821 = vmatprep.mubr.bf16.mxu0 0
        %1822 = vmatmul.mubr.bf16.gmra.mrb[0].mxu0 %v1380
        %v1823 = vpop.f32.mrb[0].mxu0
        %v1824 = vadd.f32 %v1663, %v1823
        %v1825 = vpop.f32.mrb[0].mxu0
        %v1826 = vpop.f32.mrb[0].mxu0
        %v1827 = vadd.f32 %v1666, %v1826
        %v1828 = vpop.f32.mrb[0].mxu0
        %1829 = vmatprep.mubr.bf16.mxu0 0
        %1830 = vmatmul.mubr.bf16.gmra.mrb[0].mxu0 %v1383
        %v1831 = vpop.f32.mrb[0].mxu0
        %v1832 = vadd.f32 %v1671, %v1831
        %v1833 = vpop.f32.mrb[0].mxu0
        %v1834 = vpop.f32.mrb[0].mxu0
        %v1835 = vadd.f32 %v1674, %v1834
        %v1836 = vpop.f32.mrb[0].mxu0
        %1837 = vmatprep.mubr.bf16.mxu0 0
        %1838 = vmatmul.mubr.bf16.gmra.mrb[0].mxu0 %v1386
        %v1839 = vpop.f32.mrb[0].mxu0
        %v1840 = vadd.f32 %v1679, %v1839
        %v1841 = vpop.f32.mrb[0].mxu0
        %v1842 = vpop.f32.mrb[0].mxu0
        %v1843 = vadd.f32 %v1682, %v1842
        %v1844 = vpop.f32.mrb[0].mxu0
        %1845 = vmatprep.mubr.bf16.mxu0 0
        %1846 = vmatmul.mubr.bf16.gmra.mrb[0].mxu0 %v1389
        %v1847 = vpop.f32.mrb[0].mxu0
        %v1848 = vadd.f32 %v1687, %v1847
        %v1849 = vpop.f32.mrb[0].mxu0
        %v1850 = vpop.f32.mrb[0].mxu0
        %v1851 = vadd.f32 %v1690, %v1850
        %v1852 = vpop.f32.mrb[0].mxu0
        %1853 = vmatprep.mubr.bf16.mxu0 0
        %1854 = vmatmul.mubr.bf16.gmra.mrb[0].mxu0 %v1392
        %v1855 = vpop.f32.mrb[0].mxu0
        %v1856 = vadd.f32 %v1695, %v1855
        %v1857 = vpop.f32.mrb[0].mxu0
        %v1858 = vpop.f32.mrb[0].mxu0
        %v1859 = vadd.f32 %v1698, %v1858
        %v1860 = vpop.f32.mrb[0].mxu0
        %1861 = vmatprep.mubr.bf16.mxu0 0
        %1862 = vmatmul.mubr.bf16.gmra.mrb[0].mxu0 %v1395
        %v1863 = vpop.f32.mrb[0].mxu0
        %v1864 = vadd.f32 %v1703, %v1863
        %v1865 = vpop.f32.mrb[0].mxu0
        %v1866 = vpop.f32.mrb[0].mxu0
        %v1867 = vadd.f32 %v1706, %v1866
        %v1868 = vpop.f32.mrb[0].mxu0
        %1869 = vmatprep.mubr.bf16.mxu0 0
        %1870 = vmatmul.mubr.bf16.gmra.mrb[0].mxu0 %v1398
        %v1871 = vpop.f32.mrb[0].mxu0
        %v1872 = vadd.f32 %v1711, %v1871
        %v1873 = vpop.f32.mrb[0].mxu0
        %v1874 = vpop.f32.mrb[0].mxu0
        %v1875 = vadd.f32 %v1714, %v1874
        %v1876 = vpop.f32.mrb[0].mxu0
        %1877 = vmatprep.mubr.bf16.mxu0 0
        %1878 = vmatmul.mubr.bf16.gmra.mrb[0].mxu0 %v1401
        %v1879 = vpop.f32.mrb[0].mxu0
        %v1880 = vadd.f32 %v1719, %v1879
        %v1881 = vpop.f32.mrb[0].mxu0
        %v1882 = vpop.f32.mrb[0].mxu0
        %v1883 = vadd.f32 %v1722, %v1882
        %v1884 = vpop.f32.mrb[0].mxu0
        %1885 = vmatprep.mubr.bf16.mxu0 0
        %1886 = vmatmul.mubr.bf16.gmra.mrb[0].mxu0 %v1404
        %v1887 = vpop.f32.mrb[0].mxu0
        %v1888 = vadd.f32 %v1727, %v1887
        %v1889 = vpop.f32.mrb[0].mxu0
        %v1890 = vpop.f32.mrb[0].mxu0
        %v1891 = vadd.f32 %v1730, %v1890
        %v1892 = vpop.f32.mrb[0].mxu0
        %1893 = vmatprep.mubr.bf16.mxu0 0
        %1894 = vmatmul.mubr.bf16.gmra.mrb[0].mxu0 %v1407
        %v1895 = vpop.f32.mrb[0].mxu0
        %v1896 = vadd.f32 %v1735, %v1895
        %v1897 = vpop.f32.mrb[0].mxu0
        %v1898 = vpop.f32.mrb[0].mxu0
        %v1899 = vadd.f32 %v1738, %v1898
        %v1900 = vpop.f32.mrb[0].mxu0
        %1901 = vmatprep.mubr.bf16.mxu0 0
        %1902 = vmatmul.mubr.bf16.gmra.mrb[0].mxu0 %v1410
        %v1903 = vpop.f32.mrb[0].mxu0
        %v1904 = vadd.f32 %v1743, %v1903
        %v1905 = vpop.f32.mrb[0].mxu0
        %v1906 = vpop.f32.mrb[0].mxu0
        %v1907 = vadd.f32 %v1746, %v1906
        %v1908 = vpop.f32.mrb[0].mxu0
        %1909 = vmatprep.mubr.bf16.mxu0 0
        %1910 = vmatmul.mubr.bf16.gmra.mrb[0].mxu0 %v1413
        %v1911 = vpop.f32.mrb[0].mxu0
        %v1912 = vadd.f32 %v1751, %v1911
        %v1913 = vpop.f32.mrb[0].mxu0
        %v1914 = vpop.f32.mrb[0].mxu0
        %v1915 = vadd.f32 %v1754, %v1914
        %v1916 = vpop.f32.mrb[0].mxu0
        %1917 = vmatprep.mubr.bf16.mxu0 0
        %1918 = vmatmul.mubr.bf16.gmra.mrb[0].mxu0 %v1416
        %v1919 = vpop.f32.mrb[0].mxu0
        %v1920 = vadd.f32 %v1759, %v1919
        %v1921 = vpop.f32.mrb[0].mxu0
        %v1922 = vpop.f32.mrb[0].mxu0
        %v1923 = vadd.f32 %v1762, %v1922
        %v1924 = vpop.f32.mrb[0].mxu0
        %1925 = vmatprep.mubr.bf16.mxu0 0
        %1926 = vmatmul.mubr.bf16.gmra.mrb[0].mxu0 %v1419
        %v1927 = vpop.f32.mrb[0].mxu0
        %v1928 = vadd.f32 %v1767, %v1927
        %v1929 = vpop.f32.mrb[0].mxu0
        %v1930 = vpop.f32.mrb[0].mxu0
        %v1931 = vadd.f32 %v1770, %v1930
        %v1932 = vpop.f32.mrb[0].mxu0
        %1933 = vdwg.mxu0
        %v1934 = vld [vmem:[#allocation2] sm:$0xff]
        %v1935 = vld [vmem:[#allocation2 + $0x8] sm:$0xff]
        %v1936 = vld [vmem:[#allocation2 + $0x10] sm:$0xff]
        %v1937 = vld [vmem:[#allocation2 + $0x18] sm:$0xff]
        %v1938 = vld [vmem:[#allocation2 + $0x20] sm:$0xff]
        %v1939 = vld [vmem:[#allocation2 + $0x28] sm:$0xff]
        %v1940 = vld [vmem:[#allocation2 + $0x30] sm:$0xff]
        %v1941 = vld [vmem:[#allocation2 + $0x38] sm:$0xff]
        %v1942 = vld [vmem:[#allocation2 + $0x40] sm:$0xff]
        %v1943 = vld [vmem:[#allocation2 + $0x48] sm:$0xff]
        %v1944 = vld [vmem:[#allocation2 + $0x50] sm:$0xff]
        %v1945 = vld [vmem:[#allocation2 + $0x58] sm:$0xff]
        %v1946 = vld [vmem:[#allocation2 + $0x60] sm:$0xff]
        %v1947 = vld [vmem:[#allocation2 + $0x68] sm:$0xff]
        %v1948 = vld [vmem:[#allocation2 + $0x70] sm:$0xff]
        %v1949 = vld [vmem:[#allocation2 + $0x78] sm:$0xff]
        %v1950 = vld [vmem:[#allocation2 + $0x80] sm:$0xff]
        %v1951 = vld [vmem:[#allocation2 + $0x88] sm:$0xff]
        %v1952 = vld [vmem:[#allocation2 + $0x90] sm:$0xff]
        %v1953 = vld [vmem:[#allocation2 + $0x98] sm:$0xff]
        %v1954 = vld [vmem:[#allocation2 + $0xa0] sm:$0xff]
        %v1955 = vld [vmem:[#allocation2 + $0xa8] sm:$0xff]
        %v1956 = vld [vmem:[#allocation2 + $0xb0] sm:$0xff]
        %v1957 = vld [vmem:[#allocation2 + $0xb8] sm:$0xff]
        %v1958 = vld [vmem:[#allocation2 + $0xc0] sm:$0xff]
        %v1959 = vld [vmem:[#allocation2 + $0xc8] sm:$0xff]
        %v1960 = vld [vmem:[#allocation2 + $0xd0] sm:$0xff]
        %v1961 = vld [vmem:[#allocation2 + $0xd8] sm:$0xff]
        %v1962 = vld [vmem:[#allocation2 + $0xe0] sm:$0xff]
        %v1963 = vld [vmem:[#allocation2 + $0xe8] sm:$0xff]
        %v1964 = vld [vmem:[#allocation2 + $0xf0] sm:$0xff]
        %v1965 = vld [vmem:[#allocation2 + $0xf8] sm:$0xff]
        %v1966 = vadd.f32 %v1934, %v1808
        %v1967 = vadd.f32 %v1935, %v1811
        %v1968 = vadd.f32 %v1936, %v1816
        %v1969 = vadd.f32 %v1937, %v1819
        %v1970 = vadd.f32 %v1938, %v1824
        %v1971 = vadd.f32 %v1939, %v1827
        %v1972 = vadd.f32 %v1940, %v1832
        %v1973 = vadd.f32 %v1941, %v1835
        %v1974 = vadd.f32 %v1942, %v1840
        %v1975 = vadd.f32 %v1943, %v1843
        %v1976 = vadd.f32 %v1944, %v1848
        %v1977 = vadd.f32 %v1945, %v1851
        %v1978 = vadd.f32 %v1946, %v1856
        %v1979 = vadd.f32 %v1947, %v1859
        %v1980 = vadd.f32 %v1948, %v1864
        %v1981 = vadd.f32 %v1949, %v1867
        %v1982 = vadd.f32 %v1950, %v1872
        %v1983 = vadd.f32 %v1951, %v1875
        %v1984 = vadd.f32 %v1952, %v1880
        %v1985 = vadd.f32 %v1953, %v1883
        %v1986 = vadd.f32 %v1954, %v1888
        %v1987 = vadd.f32 %v1955, %v1891
        %v1988 = vadd.f32 %v1956, %v1896
        %v1989 = vadd.f32 %v1957, %v1899
        %v1990 = vadd.f32 %v1958, %v1904
        %v1991 = vadd.f32 %v1959, %v1907
        %v1992 = vadd.f32 %v1960, %v1912
        %v1993 = vadd.f32 %v1961, %v1915
        %v1994 = vadd.f32 %v1962, %v1920
        %v1995 = vadd.f32 %v1963, %v1923
        %v1996 = vadd.f32 %v1964, %v1928
        %v1997 = vadd.f32 %v1965, %v1931
        %1998 = vst [vmem:[#allocation2] sm:$0xff] %v1966
        %1999 = vst [vmem:[#allocation2 + $0x8] sm:$0xff] %v1967
        %2000 = vst [vmem:[#allocation2 + $0x10] sm:$0xff] %v1968
        %2001 = vst [vmem:[#allocation2 + $0x18] sm:$0xff] %v1969
        %2002 = vst [vmem:[#allocation2 + $0x20] sm:$0xff] %v1970
        %2003 = vst [vmem:[#allocation2 + $0x28] sm:$0xff] %v1971
        %2004 = vst [vmem:[#allocation2 + $0x30] sm:$0xff] %v1972
        %2005 = vst [vmem:[#allocation2 + $0x38] sm:$0xff] %v1973
        %2006 = vst [vmem:[#allocation2 + $0x40] sm:$0xff] %v1974
        %2007 = vst [vmem:[#allocation2 + $0x48] sm:$0xff] %v1975
        %2008 = vst [vmem:[#allocation2 + $0x50] sm:$0xff] %v1976
        %2009 = vst [vmem:[#allocation2 + $0x58] sm:$0xff] %v1977
        %2010 = vst [vmem:[#allocation2 + $0x60] sm:$0xff] %v1978
        %2011 = vst [vmem:[#allocation2 + $0x68] sm:$0xff] %v1979
        %2012 = vst [vmem:[#allocation2 + $0x70] sm:$0xff] %v1980
        %2013 = vst [vmem:[#allocation2 + $0x78] sm:$0xff] %v1981
        %2014 = vst [vmem:[#allocation2 + $0x80] sm:$0xff] %v1982
        %2015 = vst [vmem:[#allocation2 + $0x88] sm:$0xff] %v1983
        %2016 = vst [vmem:[#allocation2 + $0x90] sm:$0xff] %v1984
        %2017 = vst [vmem:[#allocation2 + $0x98] sm:$0xff] %v1985
        %2018 = vst [vmem:[#allocation2 + $0xa0] sm:$0xff] %v1986
        %2019 = vst [vmem:[#allocation2 + $0xa8] sm:$0xff] %v1987
        %2020 = vst [vmem:[#allocation2 + $0xb0] sm:$0xff] %v1988
        %2021 = vst [vmem:[#allocation2 + $0xb8] sm:$0xff] %v1989
        %2022 = vst [vmem:[#allocation2 + $0xc0] sm:$0xff] %v1990
        %2023 = vst [vmem:[#allocation2 + $0xc8] sm:$0xff] %v1991
        %2024 = vst [vmem:[#allocation2 + $0xd0] sm:$0xff] %v1992
        %2025 = vst [vmem:[#allocation2 + $0xd8] sm:$0xff] %v1993
        %2026 = vst [vmem:[#allocation2 + $0xe0] sm:$0xff] %v1994
        %2027 = vst [vmem:[#allocation2 + $0xe8] sm:$0xff] %v1995
        %2028 = vst [vmem:[#allocation2 + $0xf0] sm:$0xff] %v1996
        %2029 = vst [vmem:[#allocation2 + $0xf8] sm:$0xff] %v1997
        %s2030 = sadd.s32 %s225, 2
        %s2031 = smul.u32 %s2030, 6
        %s2032 = smul.addr %s2031, 4
        %s2033 = scalar_lea.vmem %s215, %s2032
        %v2034 = vld [vmem:[%s2033] sm:$0xff]
        %v2035 = vld [vmem:[%s2033 + $0x8] sm:$0xf]
        %v2036 = vld [vmem:[%s2033 + $0xc] sm:$0xff]
        %v2037 = vld [vmem:[%s2033 + $0x14] sm:$0xf]
        %v2038 = vld [vmem:[%s2033 + $0x18] sm:$0xff]
        %v2039 = vld [vmem:[%s2033 + $0x20] sm:$0xf]
        %v2040 = vld [vmem:[%s2033 + $0x24] sm:$0xff]
        %v2041 = vld [vmem:[%s2033 + $0x2c] sm:$0xf]
        %v2042 = vld [vmem:[%s2033 + $0x30] sm:$0xff]
        %v2043 = vld [vmem:[%s2033 + $0x38] sm:$0xf]
        %v2044 = vld [vmem:[%s2033 + $0x3c] sm:$0xff]
        %v2045 = vld [vmem:[%s2033 + $0x44] sm:$0xf]
        %v2046 = vld [vmem:[%s2033 + $0x48] sm:$0xff]
        %v2047 = vld [vmem:[%s2033 + $0x50] sm:$0xf]
        %v2048 = vld [vmem:[%s2033 + $0x54] sm:$0xff]
        %v2049 = vld [vmem:[%s2033 + $0x5c] sm:$0xf]
        %v2050 = vld [vmem:[%s2033 + $0x60] sm:$0xff]
        %v2051 = vld [vmem:[%s2033 + $0x68] sm:$0xf]
        %v2052 = vld [vmem:[%s2033 + $0x6c] sm:$0xff]
        %v2053 = vld [vmem:[%s2033 + $0x74] sm:$0xf]
        %v2054 = vld [vmem:[%s2033 + $0x78] sm:$0xff]
        %v2055 = vld [vmem:[%s2033 + $0x80] sm:$0xf]
        %v2056 = vld [vmem:[%s2033 + $0x84] sm:$0xff]
        %v2057 = vld [vmem:[%s2033 + $0x8c] sm:$0xf]
        %v2058 = vld [vmem:[%s2033 + $0x90] sm:$0xff]
        %v2059 = vld [vmem:[%s2033 + $0x98] sm:$0xf]
        %v2060 = vld [vmem:[%s2033 + $0x9c] sm:$0xff]
        %v2061 = vld [vmem:[%s2033 + $0xa4] sm:$0xf]
        %v2062 = vld [vmem:[%s2033 + $0xa8] sm:$0xff]
        %v2063 = vld [vmem:[%s2033 + $0xb0] sm:$0xf]
        %v2064 = vld [vmem:[%s2033 + $0xb4] sm:$0xff]
        %v2065 = vld [vmem:[%s2033 + $0xbc] sm:$0xf]
        %v2066 = vld [vmem:[%s2033 + $0xc0] sm:$0xff]
        %v2067 = vld [vmem:[%s2033 + $0xc8] sm:$0xf]
        %v2068 = vld [vmem:[%s2033 + $0xcc] sm:$0xff]
        %v2069 = vld [vmem:[%s2033 + $0xd4] sm:$0xf]
        %v2070 = vld [vmem:[%s2033 + $0xd8] sm:$0xff]
        %v2071 = vld [vmem:[%s2033 + $0xe0] sm:$0xf]
        %v2072 = vld [vmem:[%s2033 + $0xe4] sm:$0xff]
        %v2073 = vld [vmem:[%s2033 + $0xec] sm:$0xf]
        %v2074 = vld [vmem:[%s2033 + $0xf0] sm:$0xff]
        %v2075 = vld [vmem:[%s2033 + $0xf8] sm:$0xf]
        %v2076 = vld [vmem:[%s2033 + $0xfc] sm:$0xff]
        %v2077 = vld [vmem:[%s2033 + $0x104] sm:$0xf]
        %v2078 = vld [vmem:[%s2033 + $0x108] sm:$0xff]
        %v2079 = vld [vmem:[%s2033 + $0x110] sm:$0xf]
        %v2080 = vld [vmem:[%s2033 + $0x114] sm:$0xff]
        %v2081 = vld [vmem:[%s2033 + $0x11c] sm:$0xf]
        %v2082 = vld [vmem:[%s2033 + $0x120] sm:$0xff]
        %v2083 = vld [vmem:[%s2033 + $0x128] sm:$0xf]
        %v2084 = vld [vmem:[%s2033 + $0x12c] sm:$0xff]
        %v2085 = vld [vmem:[%s2033 + $0x134] sm:$0xf]
        %v2086 = vld [vmem:[%s2033 + $0x138] sm:$0xff]
        %v2087 = vld [vmem:[%s2033 + $0x140] sm:$0xf]
        %v2088 = vld [vmem:[%s2033 + $0x144] sm:$0xff]
        %v2089 = vld [vmem:[%s2033 + $0x14c] sm:$0xf]
        %v2090 = vld [vmem:[%s2033 + $0x150] sm:$0xff]
        %v2091 = vld [vmem:[%s2033 + $0x158] sm:$0xf]
        %v2092 = vld [vmem:[%s2033 + $0x15c] sm:$0xff]
        %v2093 = vld [vmem:[%s2033 + $0x164] sm:$0xf]
        %v2094 = vld [vmem:[%s2033 + $0x168] sm:$0xff]
        %v2095 = vld [vmem:[%s2033 + $0x170] sm:$0xf]
        %v2096 = vld [vmem:[%s2033 + $0x174] sm:$0xff]
        %v2097 = vld [vmem:[%s2033 + $0x17c] sm:$0xf]
        %s2098 = scalar_lea.vmem %s219, 384
        %v2099 = vld [vmem:[%s2098] sm:$0xf]
        %v2100 = vld [vmem:[%s2098 + $0x4] sm:$0xf]
        %v2101 = vld [vmem:[%s2098 + $0x8] sm:$0xf]
        %v2102 = vld [vmem:[%s2098 + $0xc] sm:$0xf]
        %v2103 = vld [vmem:[%s2098 + $0x10] sm:$0xf]
        %v2104 = vld [vmem:[%s2098 + $0x14] sm:$0xf]
        %v2105 = vld [vmem:[%s2098 + $0x18] sm:$0xf]
        %v2106 = vld [vmem:[%s2098 + $0x1c] sm:$0xf]
        %v2107 = vld [vmem:[%s2098 + $0x20] sm:$0xf]
        %v2108 = vld [vmem:[%s2098 + $0x24] sm:$0xf]
        %v2109 = vld [vmem:[%s2098 + $0x28] sm:$0xf]
        %v2110 = vld [vmem:[%s2098 + $0x2c] sm:$0xf]
        %v2111 = vld [vmem:[%s2098 + $0x30] sm:$0xf]
        %v2112 = vld [vmem:[%s2098 + $0x34] sm:$0xf]
        %v2113 = vld [vmem:[%s2098 + $0x38] sm:$0xf]
        %v2114 = vld [vmem:[%s2098 + $0x3c] sm:$0xf]
        %v2115 = vld [vmem:[%s2098 + $0x40] sm:$0xf]
        %v2116 = vld [vmem:[%s2098 + $0x44] sm:$0xf]
        %v2117 = vld [vmem:[%s2098 + $0x48] sm:$0xf]
        %v2118 = vld [vmem:[%s2098 + $0x4c] sm:$0xf]
        %v2119 = vld [vmem:[%s2098 + $0x50] sm:$0xf]
        %v2120 = vld [vmem:[%s2098 + $0x54] sm:$0xf]
        %v2121 = vld [vmem:[%s2098 + $0x58] sm:$0xf]
        %v2122 = vld [vmem:[%s2098 + $0x5c] sm:$0xf]
        %v2123 = vld [vmem:[%s2098 + $0x60] sm:$0xf]
        %v2124 = vld [vmem:[%s2098 + $0x64] sm:$0xf]
        %v2125 = vld [vmem:[%s2098 + $0x68] sm:$0xf]
        %v2126 = vld [vmem:[%s2098 + $0x6c] sm:$0xf]
        %v2127 = vld [vmem:[%s2098 + $0x70] sm:$0xf]
        %v2128 = vld [vmem:[%s2098 + $0x74] sm:$0xf]
        %v2129 = vld [vmem:[%s2098 + $0x78] sm:$0xf]
        %v2130 = vld [vmem:[%s2098 + $0x7c] sm:$0xf]
        %v2131 = vld [vmem:[%s2098 + $0x80] sm:$0xf]
        %v2132 = vld [vmem:[%s2098 + $0x84] sm:$0xf]
        %v2133 = vld [vmem:[%s2098 + $0x88] sm:$0xf]
        %v2134 = vld [vmem:[%s2098 + $0x8c] sm:$0xf]
        %v2135 = vld [vmem:[%s2098 + $0x90] sm:$0xf]
        %v2136 = vld [vmem:[%s2098 + $0x94] sm:$0xf]
        %v2137 = vld [vmem:[%s2098 + $0x98] sm:$0xf]
        %v2138 = vld [vmem:[%s2098 + $0x9c] sm:$0xf]
        %v2139 = vld [vmem:[%s2098 + $0xa0] sm:$0xf]
        %v2140 = vld [vmem:[%s2098 + $0xa4] sm:$0xf]
        %v2141 = vld [vmem:[%s2098 + $0xa8] sm:$0xf]
        %v2142 = vld [vmem:[%s2098 + $0xac] sm:$0xf]
        %v2143 = vld [vmem:[%s2098 + $0xb0] sm:$0xf]
        %v2144 = vld [vmem:[%s2098 + $0xb4] sm:$0xf]
        %v2145 = vld [vmem:[%s2098 + $0xb8] sm:$0xf]
        %v2146 = vld [vmem:[%s2098 + $0xbc] sm:$0xf]
        %v2211 = vunpack.c.l.b16 %v2034
        %v2212 = vunpack.c.h.b16 %v2034
        %v2213 = vunpack.c.l.b16 %v2035
        %v2214 = vunpack.c.l.b16 %v2036
        %v2215 = vunpack.c.h.b16 %v2036
        %v2216 = vunpack.c.l.b16 %v2037
        %v2217 = vunpack.c.l.b16 %v2038
        %v2218 = vunpack.c.h.b16 %v2038
        %v2219 = vunpack.c.l.b16 %v2039
        %v2220 = vunpack.c.l.b16 %v2040
        %v2221 = vunpack.c.h.b16 %v2040
        %v2222 = vunpack.c.l.b16 %v2041
        %v2223 = vunpack.c.l.b16 %v2042
        %v2224 = vunpack.c.h.b16 %v2042
        %v2225 = vunpack.c.l.b16 %v2043
        %v2226 = vunpack.c.l.b16 %v2044
        %v2227 = vunpack.c.h.b16 %v2044
        %v2228 = vunpack.c.l.b16 %v2045
        %v2229 = vunpack.c.l.b16 %v2046
        %v2230 = vunpack.c.h.b16 %v2046
        %v2231 = vunpack.c.l.b16 %v2047
        %v2232 = vunpack.c.l.b16 %v2048
        %v2233 = vunpack.c.h.b16 %v2048
        %v2234 = vunpack.c.l.b16 %v2049
        %v2235 = vunpack.c.l.b16 %v2050
        %v2236 = vunpack.c.h.b16 %v2050
        %v2237 = vunpack.c.l.b16 %v2051
        %v2238 = vunpack.c.l.b16 %v2052
        %v2239 = vunpack.c.h.b16 %v2052
        %v2240 = vunpack.c.l.b16 %v2053
        %v2241 = vunpack.c.l.b16 %v2054
        %v2242 = vunpack.c.h.b16 %v2054
        %v2243 = vunpack.c.l.b16 %v2055
        %v2244 = vunpack.c.l.b16 %v2056
        %v2245 = vunpack.c.h.b16 %v2056
        %v2246 = vunpack.c.l.b16 %v2057
        %v2247 = vunpack.c.l.b16 %v2058
        %v2248 = vunpack.c.h.b16 %v2058
        %v2249 = vunpack.c.l.b16 %v2059
        %v2250 = vunpack.c.l.b16 %v2060
        %v2251 = vunpack.c.h.b16 %v2060
        %v2252 = vunpack.c.l.b16 %v2061
        %v2253 = vunpack.c.l.b16 %v2062
        %v2254 = vunpack.c.h.b16 %v2062
        %v2255 = vunpack.c.l.b16 %v2063
        %v2256 = vunpack.c.l.b16 %v2064
        %v2257 = vunpack.c.h.b16 %v2064
        %v2258 = vunpack.c.l.b16 %v2065
        %v2259 = vunpack.c.l.b16 %v2066
        %v2260 = vunpack.c.h.b16 %v2066
        %v2261 = vunpack.c.l.b16 %v2067
        %v2262 = vunpack.c.l.b16 %v2068
        %v2263 = vunpack.c.h.b16 %v2068
        %v2264 = vunpack.c.l.b16 %v2069
        %v2265 = vunpack.c.l.b16 %v2070
        %v2266 = vunpack.c.h.b16 %v2070
        %v2267 = vunpack.c.l.b16 %v2071
        %v2268 = vunpack.c.l.b16 %v2072
        %v2269 = vunpack.c.h.b16 %v2072
        %v2270 = vunpack.c.l.b16 %v2073
        %v2271 = vunpack.c.l.b16 %v2074
        %v2272 = vunpack.c.h.b16 %v2074
        %v2273 = vunpack.c.l.b16 %v2075
        %v2274 = vunpack.c.l.b16 %v2076
        %v2275 = vunpack.c.h.b16 %v2076
        %v2276 = vunpack.c.l.b16 %v2077
        %v2277 = vunpack.c.l.b16 %v2078
        %v2278 = vunpack.c.h.b16 %v2078
        %v2279 = vunpack.c.l.b16 %v2079
        %v2280 = vunpack.c.l.b16 %v2080
        %v2281 = vunpack.c.h.b16 %v2080
        %v2282 = vunpack.c.l.b16 %v2081
        %v2283 = vunpack.c.l.b16 %v2082
        %v2284 = vunpack.c.h.b16 %v2082
        %v2285 = vunpack.c.l.b16 %v2083
        %v2286 = vunpack.c.l.b16 %v2084
        %v2287 = vunpack.c.h.b16 %v2084
        %v2288 = vunpack.c.l.b16 %v2085
        %v2289 = vunpack.c.l.b16 %v2086
        %v2290 = vunpack.c.h.b16 %v2086
        %v2291 = vunpack.c.l.b16 %v2087
        %v2292 = vunpack.c.l.b16 %v2088
        %v2293 = vunpack.c.h.b16 %v2088
        %v2294 = vunpack.c.l.b16 %v2089
        %v2295 = vunpack.c.l.b16 %v2090
        %v2296 = vunpack.c.h.b16 %v2090
        %v2297 = vunpack.c.l.b16 %v2091
        %v2298 = vunpack.c.l.b16 %v2092
        %v2299 = vunpack.c.h.b16 %v2092
        %v2300 = vunpack.c.l.b16 %v2093
        %v2301 = vunpack.c.l.b16 %v2094
        %v2302 = vunpack.c.h.b16 %v2094
        %v2303 = vunpack.c.l.b16 %v2095
        %v2304 = vunpack.c.l.b16 %v2096
        %v2305 = vunpack.c.h.b16 %v2096
        %v2306 = vunpack.c.l.b16 %v2097
        %v2307 = vpack.c.b16 %v2214, %v2211
        %v2308 = vpack.c.b16 %v2215, %v2212
        %v2309 = vpack.c.b16 %v2216, %v2213
        %v2310 = vpack.c.b16 %v2220, %v2217
        %v2311 = vpack.c.b16 %v2221, %v2218
        %v2312 = vpack.c.b16 %v2222, %v2219
        %v2313 = vpack.c.b16 %v2226, %v2223
        %v2314 = vpack.c.b16 %v2227, %v2224
        %v2315 = vpack.c.b16 %v2228, %v2225
        %v2316 = vpack.c.b16 %v2232, %v2229
        %v2317 = vpack.c.b16 %v2233, %v2230
        %v2318 = vpack.c.b16 %v2234, %v2231
        %v2319 = vpack.c.b16 %v2238, %v2235
        %v2320 = vpack.c.b16 %v2239, %v2236
        %v2321 = vpack.c.b16 %v2240, %v2237
        %v2322 = vpack.c.b16 %v2244, %v2241
        %v2323 = vpack.c.b16 %v2245, %v2242
        %v2324 = vpack.c.b16 %v2246, %v2243
        %v2325 = vpack.c.b16 %v2250, %v2247
        %v2326 = vpack.c.b16 %v2251, %v2248
        %v2327 = vpack.c.b16 %v2252, %v2249
        %v2328 = vpack.c.b16 %v2256, %v2253
        %v2329 = vpack.c.b16 %v2257, %v2254
        %v2330 = vpack.c.b16 %v2258, %v2255
        %v2331 = vpack.c.b16 %v2262, %v2259
        %v2332 = vpack.c.b16 %v2263, %v2260
        %v2333 = vpack.c.b16 %v2264, %v2261
        %v2334 = vpack.c.b16 %v2268, %v2265
        %v2335 = vpack.c.b16 %v2269, %v2266
        %v2336 = vpack.c.b16 %v2270, %v2267
        %v2337 = vpack.c.b16 %v2274, %v2271
        %v2338 = vpack.c.b16 %v2275, %v2272
        %v2339 = vpack.c.b16 %v2276, %v2273
        %v2340 = vpack.c.b16 %v2280, %v2277
        %v2341 = vpack.c.b16 %v2281, %v2278
        %v2342 = vpack.c.b16 %v2282, %v2279
        %v2343 = vpack.c.b16 %v2286, %v2283
        %v2344 = vpack.c.b16 %v2287, %v2284
        %v2345 = vpack.c.b16 %v2288, %v2285
        %v2346 = vpack.c.b16 %v2292, %v2289
        %v2347 = vpack.c.b16 %v2293, %v2290
        %v2348 = vpack.c.b16 %v2294, %v2291
        %v2349 = vpack.c.b16 %v2298, %v2295
        %v2350 = vpack.c.b16 %v2299, %v2296
        %v2351 = vpack.c.b16 %v2300, %v2297
        %v2352 = vpack.c.b16 %v2304, %v2301
        %v2353 = vpack.c.b16 %v2305, %v2302
        %v2354 = vpack.c.b16 %v2306, %v2303
        %v2451 = vunpack.c.l.b16 %v2099
        %v2452 = vunpack.c.l.b16 %v2100
        %v2453 = vunpack.c.l.b16 %v2101
        %v2454 = vunpack.c.l.b16 %v2102
        %v2455 = vunpack.c.l.b16 %v2103
        %v2456 = vunpack.c.l.b16 %v2104
        %v2457 = vunpack.c.l.b16 %v2105
        %v2458 = vunpack.c.l.b16 %v2106
        %v2459 = vunpack.c.l.b16 %v2107
        %v2460 = vunpack.c.l.b16 %v2108
        %v2461 = vunpack.c.l.b16 %v2109
        %v2462 = vunpack.c.l.b16 %v2110
        %v2463 = vunpack.c.l.b16 %v2111
        %v2464 = vunpack.c.l.b16 %v2112
        %v2465 = vunpack.c.l.b16 %v2113
        %v2466 = vunpack.c.l.b16 %v2114
        %v2467 = vunpack.c.l.b16 %v2115
        %v2468 = vunpack.c.l.b16 %v2116
        %v2469 = vunpack.c.l.b16 %v2117
        %v2470 = vunpack.c.l.b16 %v2118
        %v2471 = vunpack.c.l.b16 %v2119
        %v2472 = vunpack.c.l.b16 %v2120
        %v2473 = vunpack.c.l.b16 %v2121
        %v2474 = vunpack.c.l.b16 %v2122
        %v2475 = vunpack.c.l.b16 %v2123
        %v2476 = vunpack.c.l.b16 %v2124
        %v2477 = vunpack.c.l.b16 %v2125
        %v2478 = vunpack.c.l.b16 %v2126
        %v2479 = vunpack.c.l.b16 %v2127
        %v2480 = vunpack.c.l.b16 %v2128
        %v2481 = vunpack.c.l.b16 %v2129
        %v2482 = vunpack.c.l.b16 %v2130
        %v2483 = vunpack.c.l.b16 %v2131
        %v2484 = vunpack.c.l.b16 %v2132
        %v2485 = vunpack.c.l.b16 %v2133
        %v2486 = vunpack.c.l.b16 %v2134
        %v2487 = vunpack.c.l.b16 %v2135
        %v2488 = vunpack.c.l.b16 %v2136
        %v2489 = vunpack.c.l.b16 %v2137
        %v2490 = vunpack.c.l.b16 %v2138
        %v2491 = vunpack.c.l.b16 %v2139
        %v2492 = vunpack.c.l.b16 %v2140
        %v2493 = vunpack.c.l.b16 %v2141
        %v2494 = vunpack.c.l.b16 %v2142
        %v2495 = vunpack.c.l.b16 %v2143
        %v2496 = vunpack.c.l.b16 %v2144
        %v2497 = vunpack.c.l.b16 %v2145
        %v2498 = vunpack.c.l.b16 %v2146
        %v2499 = vpack.c.b16 %v2452, %v2451
        %v2500 = vpack.c.b16 %v2454, %v2453
        %v2501 = vpack.c.b16 %v2456, %v2455
        %v2502 = vpack.c.b16 %v2458, %v2457
        %v2503 = vpack.c.b16 %v2460, %v2459
        %v2504 = vpack.c.b16 %v2462, %v2461
        %v2505 = vpack.c.b16 %v2464, %v2463
        %v2506 = vpack.c.b16 %v2466, %v2465
        %v2507 = vpack.c.b16 %v2468, %v2467
        %v2508 = vpack.c.b16 %v2470, %v2469
        %v2509 = vpack.c.b16 %v2472, %v2471
        %v2510 = vpack.c.b16 %v2474, %v2473
        %v2511 = vpack.c.b16 %v2476, %v2475
        %v2512 = vpack.c.b16 %v2478, %v2477
        %v2513 = vpack.c.b16 %v2480, %v2479
        %v2514 = vpack.c.b16 %v2482, %v2481
        %v2515 = vpack.c.b16 %v2484, %v2483
        %v2516 = vpack.c.b16 %v2486, %v2485
        %v2517 = vpack.c.b16 %v2488, %v2487
        %v2518 = vpack.c.b16 %v2490, %v2489
        %v2519 = vpack.c.b16 %v2492, %v2491
        %v2520 = vpack.c.b16 %v2494, %v2493
        %v2521 = vpack.c.b16 %v2496, %v2495
        %v2522 = vpack.c.b16 %v2498, %v2497
        %2547 = vmatprep.subr.bf16.mxu0 0
        %2548 = vmatpush1.bf16.msra.mxu0 %v2499
        %2549 = vmatprep.subr.bf16.mxu0 0
        %2550 = vmatpush1.bf16.msra.mxu0 %v2500
        %2551 = vmatprep.subr.bf16.mxu0 0
        %2552 = vmatpush1.bf16.msra.mxu0 %v2501
        %2553 = vmatprep.subr.bf16.mxu0 0
        %2554 = vmatpush1.bf16.msra.mxu0 %v2502
        %2555 = vmatprep.subr.bf16.mxu0 0
        %2556 = vmatpush1.bf16.msra.mxu0 %v2503
        %2557 = vmatprep.subr.bf16.mxu0 0
        %2558 = vmatpush1.bf16.msra.mxu0 %v2504
        %2559 = vmatprep.subr.bf16.mxu0 0
        %2560 = vmatpush1.bf16.msra.mxu0 %v2505
        %2561 = vmatprep.subr.bf16.mxu0 0
        %2562 = vmatpush1.bf16.msra.mxu0 %v2506
        %2563 = vmatprep.subr.bf16.mxu0 0
        %2564 = vmatpush1.bf16.msra.mxu0 %v2507
        %2565 = vmatprep.subr.bf16.mxu0 0
        %2566 = vmatpush1.bf16.msra.mxu0 %v2508
        %2567 = vmatprep.subr.bf16.mxu0 0
        %2568 = vmatpush1.bf16.msra.mxu0 %v2509
        %2569 = vmatprep.subr.bf16.mxu0 0
        %2570 = vmatpush1.bf16.msra.mxu0 %v2510
        %2571 = vmatprep.subr.bf16.mxu0 0
        %2572 = vmatpush1.bf16.msra.mxu0 %v2511
        %2573 = vmatprep.subr.bf16.mxu0 0
        %2574 = vmatpush1.bf16.msra.mxu0 %v2512
        %2575 = vmatprep.subr.bf16.mxu0 0
        %2576 = vmatpush1.bf16.msra.mxu0 %v2513
        %2577 = vmatprep.subr.bf16.mxu0 0
        %2578 = vmatpush1.bf16.msra.mxu0 %v2514
        %2579 = vmatprep.mubr.bf16.mxu0 %v2308
        %2580 = vmatmul.mubr.bf16.gmra.mrb[0].mxu0 %v2307
        %v2581 = vpop.f32.mrb[0].mxu0
        %v2582 = vadd.f32 0.0, %v2581
        %v2583 = vpop.f32.mrb[0].mxu0
        %v2584 = vpop.f32.mrb[0].mxu0
        %v2585 = vadd.f32 0.0, %v2584
        %v2586 = vpop.f32.mrb[0].mxu0
        %2587 = vmatprep.mubr.bf16.mxu0 %v2311
        %2588 = vmatmul.mubr.bf16.gmra.mrb[0].mxu0 %v2310
        %v2589 = vpop.f32.mrb[0].mxu0
        %v2590 = vadd.f32 0.0, %v2589
        %v2591 = vpop.f32.mrb[0].mxu0
        %v2592 = vpop.f32.mrb[0].mxu0
        %v2593 = vadd.f32 0.0, %v2592
        %v2594 = vpop.f32.mrb[0].mxu0
        %2595 = vmatprep.mubr.bf16.mxu0 %v2314
        %2596 = vmatmul.mubr.bf16.gmra.mrb[0].mxu0 %v2313
        %v2597 = vpop.f32.mrb[0].mxu0
        %v2598 = vadd.f32 0.0, %v2597
        %v2599 = vpop.f32.mrb[0].mxu0
        %v2600 = vpop.f32.mrb[0].mxu0
        %v2601 = vadd.f32 0.0, %v2600
        %v2602 = vpop.f32.mrb[0].mxu0
        %2603 = vmatprep.mubr.bf16.mxu0 %v2317
        %2604 = vmatmul.mubr.bf16.gmra.mrb[0].mxu0 %v2316
        %v2605 = vpop.f32.mrb[0].mxu0
        %v2606 = vadd.f32 0.0, %v2605
        %v2607 = vpop.f32.mrb[0].mxu0
        %v2608 = vpop.f32.mrb[0].mxu0
        %v2609 = vadd.f32 0.0, %v2608
        %v2610 = vpop.f32.mrb[0].mxu0
        %2611 = vmatprep.mubr.bf16.mxu0 %v2320
        %2612 = vmatmul.mubr.bf16.gmra.mrb[0].mxu0 %v2319
        %v2613 = vpop.f32.mrb[0].mxu0
        %v2614 = vadd.f32 0.0, %v2613
        %v2615 = vpop.f32.mrb[0].mxu0
        %v2616 = vpop.f32.mrb[0].mxu0
        %v2617 = vadd.f32 0.0, %v2616
        %v2618 = vpop.f32.mrb[0].mxu0
        %2619 = vmatprep.mubr.bf16.mxu0 %v2323
        %2620 = vmatmul.mubr.bf16.gmra.mrb[0].mxu0 %v2322
        %v2621 = vpop.f32.mrb[0].mxu0
        %v2622 = vadd.f32 0.0, %v2621
        %v2623 = vpop.f32.mrb[0].mxu0
        %v2624 = vpop.f32.mrb[0].mxu0
        %v2625 = vadd.f32 0.0, %v2624
        %v2626 = vpop.f32.mrb[0].mxu0
        %2627 = vmatprep.mubr.bf16.mxu0 %v2326
        %2628 = vmatmul.mubr.bf16.gmra.mrb[0].mxu0 %v2325
        %v2629 = vpop.f32.mrb[0].mxu0
        %v2630 = vadd.f32 0.0, %v2629
        %v2631 = vpop.f32.mrb[0].mxu0
        %v2632 = vpop.f32.mrb[0].mxu0
        %v2633 = vadd.f32 0.0, %v2632
        %v2634 = vpop.f32.mrb[0].mxu0
        %2635 = vmatprep.mubr.bf16.mxu0 %v2329
        %2636 = vmatmul.mubr.bf16.gmra.mrb[0].mxu0 %v2328
        %v2637 = vpop.f32.mrb[0].mxu0
        %v2638 = vadd.f32 0.0, %v2637
        %v2639 = vpop.f32.mrb[0].mxu0
        %v2640 = vpop.f32.mrb[0].mxu0
        %v2641 = vadd.f32 0.0, %v2640
        %v2642 = vpop.f32.mrb[0].mxu0
        %2643 = vmatprep.mubr.bf16.mxu0 %v2332
        %2644 = vmatmul.mubr.bf16.gmra.mrb[0].mxu0 %v2331
        %v2645 = vpop.f32.mrb[0].mxu0
        %v2646 = vadd.f32 0.0, %v2645
        %v2647 = vpop.f32.mrb[0].mxu0
        %v2648 = vpop.f32.mrb[0].mxu0
        %v2649 = vadd.f32 0.0, %v2648
        %v2650 = vpop.f32.mrb[0].mxu0
        %2651 = vmatprep.mubr.bf16.mxu0 %v2335
        %2652 = vmatmul.mubr.bf16.gmra.mrb[0].mxu0 %v2334
        %v2653 = vpop.f32.mrb[0].mxu0
        %v2654 = vadd.f32 0.0, %v2653
        %v2655 = vpop.f32.mrb[0].mxu0
        %v2656 = vpop.f32.mrb[0].mxu0
        %v2657 = vadd.f32 0.0, %v2656
        %v2658 = vpop.f32.mrb[0].mxu0
        %2659 = vmatprep.mubr.bf16.mxu0 %v2338
        %2660 = vmatmul.mubr.bf16.gmra.mrb[0].mxu0 %v2337
        %v2661 = vpop.f32.mrb[0].mxu0
        %v2662 = vadd.f32 0.0, %v2661
        %v2663 = vpop.f32.mrb[0].mxu0
        %v2664 = vpop.f32.mrb[0].mxu0
        %v2665 = vadd.f32 0.0, %v2664
        %v2666 = vpop.f32.mrb[0].mxu0
        %2667 = vmatprep.mubr.bf16.mxu0 %v2341
        %2668 = vmatmul.mubr.bf16.gmra.mrb[0].mxu0 %v2340
        %v2669 = vpop.f32.mrb[0].mxu0
        %v2670 = vadd.f32 0.0, %v2669
        %v2671 = vpop.f32.mrb[0].mxu0
        %v2672 = vpop.f32.mrb[0].mxu0
        %v2673 = vadd.f32 0.0, %v2672
        %v2674 = vpop.f32.mrb[0].mxu0
        %2675 = vmatprep.mubr.bf16.mxu0 %v2344
        %2676 = vmatmul.mubr.bf16.gmra.mrb[0].mxu0 %v2343
        %v2677 = vpop.f32.mrb[0].mxu0
        %v2678 = vadd.f32 0.0, %v2677
        %v2679 = vpop.f32.mrb[0].mxu0
        %v2680 = vpop.f32.mrb[0].mxu0
        %v2681 = vadd.f32 0.0, %v2680
        %v2682 = vpop.f32.mrb[0].mxu0
        %2683 = vmatprep.mubr.bf16.mxu0 %v2347
        %2684 = vmatmul.mubr.bf16.gmra.mrb[0].mxu0 %v2346
        %v2685 = vpop.f32.mrb[0].mxu0
        %v2686 = vadd.f32 0.0, %v2685
        %v2687 = vpop.f32.mrb[0].mxu0
        %v2688 = vpop.f32.mrb[0].mxu0
        %v2689 = vadd.f32 0.0, %v2688
        %v2690 = vpop.f32.mrb[0].mxu0
        %2691 = vmatprep.mubr.bf16.mxu0 %v2350
        %2692 = vmatmul.mubr.bf16.gmra.mrb[0].mxu0 %v2349
        %v2693 = vpop.f32.mrb[0].mxu0
        %v2694 = vadd.f32 0.0, %v2693
        %v2695 = vpop.f32.mrb[0].mxu0
        %v2696 = vpop.f32.mrb[0].mxu0
        %v2697 = vadd.f32 0.0, %v2696
        %v2698 = vpop.f32.mrb[0].mxu0
        %2699 = vmatprep.mubr.bf16.mxu0 %v2353
        %2700 = vmatmul.mubr.bf16.gmra.mrb[0].mxu0 %v2352
        %v2701 = vpop.f32.mrb[0].mxu0
        %v2702 = vadd.f32 0.0, %v2701
        %v2703 = vpop.f32.mrb[0].mxu0
        %v2704 = vpop.f32.mrb[0].mxu0
        %v2705 = vadd.f32 0.0, %v2704
        %v2706 = vpop.f32.mrb[0].mxu0
        %2707 = vdwg.mxu0
        %2708 = vmatprep.subr.bf16.mxu0 0
        %2709 = vmatpush1.bf16.msra.mxu0 %v2515
        %2710 = vmatprep.subr.bf16.mxu0 0
        %2711 = vmatpush1.bf16.msra.mxu0 %v2516
        %2712 = vmatprep.subr.bf16.mxu0 0
        %2713 = vmatpush1.bf16.msra.mxu0 %v2517
        %2714 = vmatprep.subr.bf16.mxu0 0
        %2715 = vmatpush1.bf16.msra.mxu0 %v2518
        %2716 = vmatprep.subr.bf16.mxu0 0
        %2717 = vmatpush1.bf16.msra.mxu0 %v2519
        %2718 = vmatprep.subr.bf16.mxu0 0
        %2719 = vmatpush1.bf16.msra.mxu0 %v2520
        %2720 = vmatprep.subr.bf16.mxu0 0
        %2721 = vmatpush1.bf16.msra.mxu0 %v2521
        %2722 = vmatprep.subr.bf16.mxu0 0
        %2723 = vmatpush1.bf16.msra.mxu0 %v2522
        %2724 = vmatprep.subr.bf16.mxu0 0
        %2725 = vmatpush1.bf16.msra.mxu0 0
        %2726 = vmatprep.subr.bf16.mxu0 0
        %2727 = vmatpush1.bf16.msra.mxu0 0
        %2728 = vmatprep.subr.bf16.mxu0 0
        %2729 = vmatpush1.bf16.msra.mxu0 0
        %2730 = vmatprep.subr.bf16.mxu0 0
        %2731 = vmatpush1.bf16.msra.mxu0 0
        %2732 = vmatprep.subr.bf16.mxu0 0
        %2733 = vmatpush1.bf16.msra.mxu0 0
        %2734 = vmatprep.subr.bf16.mxu0 0
        %2735 = vmatpush1.bf16.msra.mxu0 0
        %2736 = vmatprep.subr.bf16.mxu0 0
        %2737 = vmatpush1.bf16.msra.mxu0 0
        %2738 = vmatprep.subr.bf16.mxu0 0
        %2739 = vmatpush1.bf16.msra.mxu0 0
        %2740 = vmatprep.mubr.bf16.mxu0 0
        %2741 = vmatmul.mubr.bf16.gmra.mrb[0].mxu0 %v2309
        %v2742 = vpop.f32.mrb[0].mxu0
        %v2743 = vadd.f32 %v2582, %v2742
        %v2744 = vpop.f32.mrb[0].mxu0
        %v2745 = vpop.f32.mrb[0].mxu0
        %v2746 = vadd.f32 %v2585, %v2745
        %v2747 = vpop.f32.mrb[0].mxu0
        %2748 = vmatprep.mubr.bf16.mxu0 0
        %2749 = vmatmul.mubr.bf16.gmra.mrb[0].mxu0 %v2312
        %v2750 = vpop.f32.mrb[0].mxu0
        %v2751 = vadd.f32 %v2590, %v2750
        %v2752 = vpop.f32.mrb[0].mxu0
        %v2753 = vpop.f32.mrb[0].mxu0
        %v2754 = vadd.f32 %v2593, %v2753
        %v2755 = vpop.f32.mrb[0].mxu0
        %2756 = vmatprep.mubr.bf16.mxu0 0
        %2757 = vmatmul.mubr.bf16.gmra.mrb[0].mxu0 %v2315
        %v2758 = vpop.f32.mrb[0].mxu0
        %v2759 = vadd.f32 %v2598, %v2758
        %v2760 = vpop.f32.mrb[0].mxu0
        %v2761 = vpop.f32.mrb[0].mxu0
        %v2762 = vadd.f32 %v2601, %v2761
        %v2763 = vpop.f32.mrb[0].mxu0
        %2764 = vmatprep.mubr.bf16.mxu0 0
        %2765 = vmatmul.mubr.bf16.gmra.mrb[0].mxu0 %v2318
        %v2766 = vpop.f32.mrb[0].mxu0
        %v2767 = vadd.f32 %v2606, %v2766
        %v2768 = vpop.f32.mrb[0].mxu0
        %v2769 = vpop.f32.mrb[0].mxu0
        %v2770 = vadd.f32 %v2609, %v2769
        %v2771 = vpop.f32.mrb[0].mxu0
        %2772 = vmatprep.mubr.bf16.mxu0 0
        %2773 = vmatmul.mubr.bf16.gmra.mrb[0].mxu0 %v2321
        %v2774 = vpop.f32.mrb[0].mxu0
        %v2775 = vadd.f32 %v2614, %v2774
        %v2776 = vpop.f32.mrb[0].mxu0
        %v2777 = vpop.f32.mrb[0].mxu0
        %v2778 = vadd.f32 %v2617, %v2777
        %v2779 = vpop.f32.mrb[0].mxu0
        %2780 = vmatprep.mubr.bf16.mxu0 0
        %2781 = vmatmul.mubr.bf16.gmra.mrb[0].mxu0 %v2324
        %v2782 = vpop.f32.mrb[0].mxu0
        %v2783 = vadd.f32 %v2622, %v2782
        %v2784 = vpop.f32.mrb[0].mxu0
        %v2785 = vpop.f32.mrb[0].mxu0
        %v2786 = vadd.f32 %v2625, %v2785
        %v2787 = vpop.f32.mrb[0].mxu0
        %2788 = vmatprep.mubr.bf16.mxu0 0
        %2789 = vmatmul.mubr.bf16.gmra.mrb[0].mxu0 %v2327
        %v2790 = vpop.f32.mrb[0].mxu0
        %v2791 = vadd.f32 %v2630, %v2790
        %v2792 = vpop.f32.mrb[0].mxu0
        %v2793 = vpop.f32.mrb[0].mxu0
        %v2794 = vadd.f32 %v2633, %v2793
        %v2795 = vpop.f32.mrb[0].mxu0
        %2796 = vmatprep.mubr.bf16.mxu0 0
        %2797 = vmatmul.mubr.bf16.gmra.mrb[0].mxu0 %v2330
        %v2798 = vpop.f32.mrb[0].mxu0
        %v2799 = vadd.f32 %v2638, %v2798
        %v2800 = vpop.f32.mrb[0].mxu0
        %v2801 = vpop.f32.mrb[0].mxu0
        %v2802 = vadd.f32 %v2641, %v2801
        %v2803 = vpop.f32.mrb[0].mxu0
        %2804 = vmatprep.mubr.bf16.mxu0 0
        %2805 = vmatmul.mubr.bf16.gmra.mrb[0].mxu0 %v2333
        %v2806 = vpop.f32.mrb[0].mxu0
        %v2807 = vadd.f32 %v2646, %v2806
        %v2808 = vpop.f32.mrb[0].mxu0
        %v2809 = vpop.f32.mrb[0].mxu0
        %v2810 = vadd.f32 %v2649, %v2809
        %v2811 = vpop.f32.mrb[0].mxu0
        %2812 = vmatprep.mubr.bf16.mxu0 0
        %2813 = vmatmul.mubr.bf16.gmra.mrb[0].mxu0 %v2336
        %v2814 = vpop.f32.mrb[0].mxu0
        %v2815 = vadd.f32 %v2654, %v2814
        %v2816 = vpop.f32.mrb[0].mxu0
        %v2817 = vpop.f32.mrb[0].mxu0
        %v2818 = vadd.f32 %v2657, %v2817
        %v2819 = vpop.f32.mrb[0].mxu0
        %2820 = vmatprep.mubr.bf16.mxu0 0
        %2821 = vmatmul.mubr.bf16.gmra.mrb[0].mxu0 %v2339
        %v2822 = vpop.f32.mrb[0].mxu0
        %v2823 = vadd.f32 %v2662, %v2822
        %v2824 = vpop.f32.mrb[0].mxu0
        %v2825 = vpop.f32.mrb[0].mxu0
        %v2826 = vadd.f32 %v2665, %v2825
        %v2827 = vpop.f32.mrb[0].mxu0
        %2828 = vmatprep.mubr.bf16.mxu0 0
        %2829 = vmatmul.mubr.bf16.gmra.mrb[0].mxu0 %v2342
        %v2830 = vpop.f32.mrb[0].mxu0
        %v2831 = vadd.f32 %v2670, %v2830
        %v2832 = vpop.f32.mrb[0].mxu0
        %v2833 = vpop.f32.mrb[0].mxu0
        %v2834 = vadd.f32 %v2673, %v2833
        %v2835 = vpop.f32.mrb[0].mxu0
        %2836 = vmatprep.mubr.bf16.mxu0 0
        %2837 = vmatmul.mubr.bf16.gmra.mrb[0].mxu0 %v2345
        %v2838 = vpop.f32.mrb[0].mxu0
        %v2839 = vadd.f32 %v2678, %v2838
        %v2840 = vpop.f32.mrb[0].mxu0
        %v2841 = vpop.f32.mrb[0].mxu0
        %v2842 = vadd.f32 %v2681, %v2841
        %v2843 = vpop.f32.mrb[0].mxu0
        %2844 = vmatprep.mubr.bf16.mxu0 0
        %2845 = vmatmul.mubr.bf16.gmra.mrb[0].mxu0 %v2348
        %v2846 = vpop.f32.mrb[0].mxu0
        %v2847 = vadd.f32 %v2686, %v2846
        %v2848 = vpop.f32.mrb[0].mxu0
        %v2849 = vpop.f32.mrb[0].mxu0
        %v2850 = vadd.f32 %v2689, %v2849
        %v2851 = vpop.f32.mrb[0].mxu0
        %2852 = vmatprep.mubr.bf16.mxu0 0
        %2853 = vmatmul.mubr.bf16.gmra.mrb[0].mxu0 %v2351
        %v2854 = vpop.f32.mrb[0].mxu0
        %v2855 = vadd.f32 %v2694, %v2854
        %v2856 = vpop.f32.mrb[0].mxu0
        %v2857 = vpop.f32.mrb[0].mxu0
        %v2858 = vadd.f32 %v2697, %v2857
        %v2859 = vpop.f32.mrb[0].mxu0
        %2860 = vmatprep.mubr.bf16.mxu0 0
        %2861 = vmatmul.mubr.bf16.gmra.mrb[0].mxu0 %v2354
        %v2862 = vpop.f32.mrb[0].mxu0
        %v2863 = vadd.f32 %v2702, %v2862
        %v2864 = vpop.f32.mrb[0].mxu0
        %v2865 = vpop.f32.mrb[0].mxu0
        %v2866 = vadd.f32 %v2705, %v2865
        %v2867 = vpop.f32.mrb[0].mxu0
        %2868 = vdwg.mxu0
        %v2869 = vld [vmem:[#allocation2] sm:$0xff]
        %v2870 = vld [vmem:[#allocation2 + $0x8] sm:$0xff]
        %v2871 = vld [vmem:[#allocation2 + $0x10] sm:$0xff]
        %v2872 = vld [vmem:[#allocation2 + $0x18] sm:$0xff]
        %v2873 = vld [vmem:[#allocation2 + $0x20] sm:$0xff]
        %v2874 = vld [vmem:[#allocation2 + $0x28] sm:$0xff]
        %v2875 = vld [vmem:[#allocation2 + $0x30] sm:$0xff]
        %v2876 = vld [vmem:[#allocation2 + $0x38] sm:$0xff]
        %v2877 = vld [vmem:[#allocation2 + $0x40] sm:$0xff]
        %v2878 = vld [vmem:[#allocation2 + $0x48] sm:$0xff]
        %v2879 = vld [vmem:[#allocation2 + $0x50] sm:$0xff]
        %v2880 = vld [vmem:[#allocation2 + $0x58] sm:$0xff]
        %v2881 = vld [vmem:[#allocation2 + $0x60] sm:$0xff]
        %v2882 = vld [vmem:[#allocation2 + $0x68] sm:$0xff]
        %v2883 = vld [vmem:[#allocation2 + $0x70] sm:$0xff]
        %v2884 = vld [vmem:[#allocation2 + $0x78] sm:$0xff]
        %v2885 = vld [vmem:[#allocation2 + $0x80] sm:$0xff]
        %v2886 = vld [vmem:[#allocation2 + $0x88] sm:$0xff]
        %v2887 = vld [vmem:[#allocation2 + $0x90] sm:$0xff]
        %v2888 = vld [vmem:[#allocation2 + $0x98] sm:$0xff]
        %v2889 = vld [vmem:[#allocation2 + $0xa0] sm:$0xff]
        %v2890 = vld [vmem:[#allocation2 + $0xa8] sm:$0xff]
        %v2891 = vld [vmem:[#allocation2 + $0xb0] sm:$0xff]
        %v2892 = vld [vmem:[#allocation2 + $0xb8] sm:$0xff]
        %v2893 = vld [vmem:[#allocation2 + $0xc0] sm:$0xff]
        %v2894 = vld [vmem:[#allocation2 + $0xc8] sm:$0xff]
        %v2895 = vld [vmem:[#allocation2 + $0xd0] sm:$0xff]
        %v2896 = vld [vmem:[#allocation2 + $0xd8] sm:$0xff]
        %v2897 = vld [vmem:[#allocation2 + $0xe0] sm:$0xff]
        %v2898 = vld [vmem:[#allocation2 + $0xe8] sm:$0xff]
        %v2899 = vld [vmem:[#allocation2 + $0xf0] sm:$0xff]
        %v2900 = vld [vmem:[#allocation2 + $0xf8] sm:$0xff]
        %v2901 = vadd.f32 %v2869, %v2743
        %v2902 = vadd.f32 %v2870, %v2746
        %v2903 = vadd.f32 %v2871, %v2751
        %v2904 = vadd.f32 %v2872, %v2754
        %v2905 = vadd.f32 %v2873, %v2759
        %v2906 = vadd.f32 %v2874, %v2762
        %v2907 = vadd.f32 %v2875, %v2767
        %v2908 = vadd.f32 %v2876, %v2770
        %v2909 = vadd.f32 %v2877, %v2775
        %v2910 = vadd.f32 %v2878, %v2778
        %v2911 = vadd.f32 %v2879, %v2783
        %v2912 = vadd.f32 %v2880, %v2786
        %v2913 = vadd.f32 %v2881, %v2791
        %v2914 = vadd.f32 %v2882, %v2794
        %v2915 = vadd.f32 %v2883, %v2799
        %v2916 = vadd.f32 %v2884, %v2802
        %v2917 = vadd.f32 %v2885, %v2807
        %v2918 = vadd.f32 %v2886, %v2810
        %v2919 = vadd.f32 %v2887, %v2815
        %v2920 = vadd.f32 %v2888, %v2818
        %v2921 = vadd.f32 %v2889, %v2823
        %v2922 = vadd.f32 %v2890, %v2826
        %v2923 = vadd.f32 %v2891, %v2831
        %v2924 = vadd.f32 %v2892, %v2834
        %v2925 = vadd.f32 %v2893, %v2839
        %v2926 = vadd.f32 %v2894, %v2842
        %v2927 = vadd.f32 %v2895, %v2847
        %v2928 = vadd.f32 %v2896, %v2850
        %v2929 = vadd.f32 %v2897, %v2855
        %v2930 = vadd.f32 %v2898, %v2858
        %v2931 = vadd.f32 %v2899, %v2863
        %v2932 = vadd.f32 %v2900, %v2866
        %2933 = vst [vmem:[#allocation2] sm:$0xff] %v2901
        %2934 = vst [vmem:[#allocation2 + $0x8] sm:$0xff] %v2902
        %2935 = vst [vmem:[#allocation2 + $0x10] sm:$0xff] %v2903
        %2936 = vst [vmem:[#allocation2 + $0x18] sm:$0xff] %v2904
        %2937 = vst [vmem:[#allocation2 + $0x20] sm:$0xff] %v2905
        %2938 = vst [vmem:[#allocation2 + $0x28] sm:$0xff] %v2906
        %2939 = vst [vmem:[#allocation2 + $0x30] sm:$0xff] %v2907
        %2940 = vst [vmem:[#allocation2 + $0x38] sm:$0xff] %v2908
        %2941 = vst [vmem:[#allocation2 + $0x40] sm:$0xff] %v2909
        %2942 = vst [vmem:[#allocation2 + $0x48] sm:$0xff] %v2910
        %2943 = vst [vmem:[#allocation2 + $0x50] sm:$0xff] %v2911
        %2944 = vst [vmem:[#allocation2 + $0x58] sm:$0xff] %v2912
        %2945 = vst [vmem:[#allocation2 + $0x60] sm:$0xff] %v2913
        %2946 = vst [vmem:[#allocation2 + $0x68] sm:$0xff] %v2914
        %2947 = vst [vmem:[#allocation2 + $0x70] sm:$0xff] %v2915
        %2948 = vst [vmem:[#allocation2 + $0x78] sm:$0xff] %v2916
        %2949 = vst [vmem:[#allocation2 + $0x80] sm:$0xff] %v2917
        %2950 = vst [vmem:[#allocation2 + $0x88] sm:$0xff] %v2918
        %2951 = vst [vmem:[#allocation2 + $0x90] sm:$0xff] %v2919
        %2952 = vst [vmem:[#allocation2 + $0x98] sm:$0xff] %v2920
        %2953 = vst [vmem:[#allocation2 + $0xa0] sm:$0xff] %v2921
        %2954 = vst [vmem:[#allocation2 + $0xa8] sm:$0xff] %v2922
        %2955 = vst [vmem:[#allocation2 + $0xb0] sm:$0xff] %v2923
        %2956 = vst [vmem:[#allocation2 + $0xb8] sm:$0xff] %v2924
        %2957 = vst [vmem:[#allocation2 + $0xc0] sm:$0xff] %v2925
        %2958 = vst [vmem:[#allocation2 + $0xc8] sm:$0xff] %v2926
        %2959 = vst [vmem:[#allocation2 + $0xd0] sm:$0xff] %v2927
        %2960 = vst [vmem:[#allocation2 + $0xd8] sm:$0xff] %v2928
        %2961 = vst [vmem:[#allocation2 + $0xe0] sm:$0xff] %v2929
        %2962 = vst [vmem:[#allocation2 + $0xe8] sm:$0xff] %v2930
        %2963 = vst [vmem:[#allocation2 + $0xf0] sm:$0xff] %v2931
        %2964 = vst [vmem:[#allocation2 + $0xf8] sm:$0xff] %v2932
        %v2965 = vld [vmem:[#allocation2] sm:$0xff]
        %v2966 = vld [vmem:[#allocation2 + $0x8] sm:$0xff]
        %v2967 = vld [vmem:[#allocation2 + $0x10] sm:$0xff]
        %v2968 = vld [vmem:[#allocation2 + $0x18] sm:$0xff]
        %v2969 = vld [vmem:[#allocation2 + $0x20] sm:$0xff]
        %v2970 = vld [vmem:[#allocation2 + $0x28] sm:$0xff]
        %v2971 = vld [vmem:[#allocation2 + $0x30] sm:$0xff]
        %v2972 = vld [vmem:[#allocation2 + $0x38] sm:$0xff]
        %v2973 = vld [vmem:[#allocation2 + $0x40] sm:$0xff]
        %v2974 = vld [vmem:[#allocation2 + $0x48] sm:$0xff]
        %v2975 = vld [vmem:[#allocation2 + $0x50] sm:$0xff]
        %v2976 = vld [vmem:[#allocation2 + $0x58] sm:$0xff]
        %v2977 = vld [vmem:[#allocation2 + $0x60] sm:$0xff]
        %v2978 = vld [vmem:[#allocation2 + $0x68] sm:$0xff]
        %v2979 = vld [vmem:[#allocation2 + $0x70] sm:$0xff]
        %v2980 = vld [vmem:[#allocation2 + $0x78] sm:$0xff]
        %v2981 = vld [vmem:[#allocation2 + $0x80] sm:$0xff]
        %v2982 = vld [vmem:[#allocation2 + $0x88] sm:$0xff]
        %v2983 = vld [vmem:[#allocation2 + $0x90] sm:$0xff]
        %v2984 = vld [vmem:[#allocation2 + $0x98] sm:$0xff]
        %v2985 = vld [vmem:[#allocation2 + $0xa0] sm:$0xff]
        %v2986 = vld [vmem:[#allocation2 + $0xa8] sm:$0xff]
        %v2987 = vld [vmem:[#allocation2 + $0xb0] sm:$0xff]
        %v2988 = vld [vmem:[#allocation2 + $0xb8] sm:$0xff]
        %v2989 = vld [vmem:[#allocation2 + $0xc0] sm:$0xff]
        %v2990 = vld [vmem:[#allocation2 + $0xc8] sm:$0xff]
        %v2991 = vld [vmem:[#allocation2 + $0xd0] sm:$0xff]
        %v2992 = vld [vmem:[#allocation2 + $0xd8] sm:$0xff]
        %v2993 = vld [vmem:[#allocation2 + $0xe0] sm:$0xff]
        %v2994 = vld [vmem:[#allocation2 + $0xe8] sm:$0xff]
        %v2995 = vld [vmem:[#allocation2 + $0xf0] sm:$0xff]
        %v2996 = vld [vmem:[#allocation2 + $0xf8] sm:$0xff]
        %v2997 = vld [vmem:[%s222] sm:$0x1]
        %v2999 = vlaneseq
        %v3000 = vshrl.u32 %v2999, 7
        %v3001 = vsub.s32 0, %v3000
        %v3002 = vrot.slane %v2997, %v3001
        %v3004 = vadd.f32 %v2965, %v3002
        %v3005 = vadd.f32 %v2966, %v3002
        %v3006 = vadd.f32 %v2967, %v3002
        %v3007 = vadd.f32 %v2968, %v3002
        %v3008 = vadd.f32 %v2969, %v3002
        %v3009 = vadd.f32 %v2970, %v3002
        %v3010 = vadd.f32 %v2971, %v3002
        %v3011 = vadd.f32 %v2972, %v3002
        %v3012 = vadd.f32 %v2973, %v3002
        %v3013 = vadd.f32 %v2974, %v3002
        %v3014 = vadd.f32 %v2975, %v3002
        %v3015 = vadd.f32 %v2976, %v3002
        %v3016 = vadd.f32 %v2977, %v3002
        %v3017 = vadd.f32 %v2978, %v3002
        %v3018 = vadd.f32 %v2979, %v3002
        %v3019 = vadd.f32 %v2980, %v3002
        %v3020 = vadd.f32 %v2981, %v3002
        %v3021 = vadd.f32 %v2982, %v3002
        %v3022 = vadd.f32 %v2983, %v3002
        %v3023 = vadd.f32 %v2984, %v3002
        %v3024 = vadd.f32 %v2985, %v3002
        %v3025 = vadd.f32 %v2986, %v3002
        %v3026 = vadd.f32 %v2987, %v3002
        %v3027 = vadd.f32 %v2988, %v3002
        %v3028 = vadd.f32 %v2989, %v3002
        %v3029 = vadd.f32 %v2990, %v3002
        %v3030 = vadd.f32 %v2991, %v3002
        %v3031 = vadd.f32 %v2992, %v3002
        %v3032 = vadd.f32 %v2993, %v3002
        %v3033 = vadd.f32 %v2994, %v3002
        %v3034 = vadd.f32 %v2995, %v3002
        %v3035 = vadd.f32 %v2996, %v3002
        %v3036 = vtanh.pop %v3004
        %v3037 = vtanh.pop %v3005
        %v3038 = vtanh.pop %v3006
        %v3039 = vtanh.pop %v3007
        %v3040 = vtanh.pop %v3008
        %v3041 = vtanh.pop %v3009
        %v3042 = vtanh.pop %v3010
        %v3043 = vtanh.pop %v3011
        %v3044 = vtanh.pop %v3012
        %v3045 = vtanh.pop %v3013
        %v3046 = vtanh.pop %v3014
        %v3047 = vtanh.pop %v3015
        %v3048 = vtanh.pop %v3016
        %v3049 = vtanh.pop %v3017
        %v3050 = vtanh.pop %v3018
        %v3051 = vtanh.pop %v3019
        %v3052 = vtanh.pop %v3020
        %v3053 = vtanh.pop %v3021
        %v3054 = vtanh.pop %v3022
        %v3055 = vtanh.pop %v3023
        %v3056 = vtanh.pop %v3024
        %v3057 = vtanh.pop %v3025
        %v3058 = vtanh.pop %v3026
        %v3059 = vtanh.pop %v3027
        %v3060 = vtanh.pop %v3028
        %v3061 = vtanh.pop %v3029
        %v3062 = vtanh.pop %v3030
        %v3063 = vtanh.pop %v3031
        %v3064 = vtanh.pop %v3032
        %v3065 = vtanh.pop %v3033
        %v3066 = vtanh.pop %v3034
        %v3067 = vtanh.pop %v3035
        %3068 = vst [vmem:[%s210] sm:$0xff] %v3036
        %3069 = vst [vmem:[%s210 + $0x8] sm:$0xff] %v3037
        %3070 = vst [vmem:[%s210 + $0x10] sm:$0xff] %v3038
        %3071 = vst [vmem:[%s210 + $0x18] sm:$0xff] %v3039
        %3072 = vst [vmem:[%s210 + $0x20] sm:$0xff] %v3040
        %3073 = vst [vmem:[%s210 + $0x28] sm:$0xff] %v3041
        %3074 = vst [vmem:[%s210 + $0x30] sm:$0xff] %v3042
        %3075 = vst [vmem:[%s210 + $0x38] sm:$0xff] %v3043
        %3076 = vst [vmem:[%s210 + $0x40] sm:$0xff] %v3044
        %3077 = vst [vmem:[%s210 + $0x48] sm:$0xff] %v3045
        %3078 = vst [vmem:[%s210 + $0x50] sm:$0xff] %v3046
        %3079 = vst [vmem:[%s210 + $0x58] sm:$0xff] %v3047
        %3080 = vst [vmem:[%s210 + $0x60] sm:$0xff] %v3048
        %3081 = vst [vmem:[%s210 + $0x68] sm:$0xff] %v3049
        %3082 = vst [vmem:[%s210 + $0x70] sm:$0xff] %v3050
        %3083 = vst [vmem:[%s210 + $0x78] sm:$0xff] %v3051
        %3084 = vst [vmem:[%s210 + $0x80] sm:$0xff] %v3052
        %3085 = vst [vmem:[%s210 + $0x88] sm:$0xff] %v3053
        %3086 = vst [vmem:[%s210 + $0x90] sm:$0xff] %v3054
        %3087 = vst [vmem:[%s210 + $0x98] sm:$0xff] %v3055
        %3088 = vst [vmem:[%s210 + $0xa0] sm:$0xff] %v3056
        %3089 = vst [vmem:[%s210 + $0xa8] sm:$0xff] %v3057
        %3090 = vst [vmem:[%s210 + $0xb0] sm:$0xff] %v3058
        %3091 = vst [vmem:[%s210 + $0xb8] sm:$0xff] %v3059
        %3092 = vst [vmem:[%s210 + $0xc0] sm:$0xff] %v3060
        %3093 = vst [vmem:[%s210 + $0xc8] sm:$0xff] %v3061
        %3094 = vst [vmem:[%s210 + $0xd0] sm:$0xff] %v3062
        %3095 = vst [vmem:[%s210 + $0xd8] sm:$0xff] %v3063
        %3096 = vst [vmem:[%s210 + $0xe0] sm:$0xff] %v3064
        %3097 = vst [vmem:[%s210 + $0xe8] sm:$0xff] %v3065
        %3098 = vst [vmem:[%s210 + $0xf0] sm:$0xff] %v3066
        %3099 = vst [vmem:[%s210 + $0xf8] sm:$0xff] %v3067
        %s3100 = sand.u32 %s126, 1
        %s3101 = scalar_lea.sflag [#allocation4], %s3100
        %s3102 = sand.u32 %s126, 1
        %s3103 = smul.addr %s3102, 256
        %s3104 = scalar_lea.vmem [#allocation3], %s3103
        // Predicated region
        $region33: #{conv3x3_tanh.1} parent=31 // pred_check
          %p3105 = pneg %p136
        $region34: #{conv3x3_tanh.1} parent=31 // pred_check_branch
          %3107 = sbr.rel (%p3105) target = $region36
        $region35: #{conv3x3_tanh.1} parent=31 // pred_region
          %s3108 = smul.u32 16, %s24
          %s3110 = ssub.s32 4096, 4096
          %3111 = vsyncadd %s3101, %s3110
          %s3112 = smul.addr %s3108, 2
          %s3113 = sadd.s32 %s23, %s3112
          %s3114 = smul.addr %s22, 32
          %s3115 = sadd.s32 %s3113, %s3114
          %s3116 = smul.addr %s3115, 128
          %s3117 = scalar_lea.hbm %s3, %s3116
          %s3118 = sshll.u32 %s3104, 4
          %s3119 = int_to_ptr.vmem [resolvable:$true] %s3118
          %3124 = dma.vmem_to_hbm [thread:$0]  %s3119, 4096, %s3117, %s3101, 128, 128, 8
        $region36: #{conv3x3_tanh.1} parent=31 // pred_fallthru
          _
      $region32: #{conv3x3_tanh.1} parent=5 // pred_fallthru
        _
      %p3125 = scmp.le.s32.totalorder 2, %s12
      // Predicated region
      $region37: #{conv3x3_tanh.1} parent=5 // pred_check
        %p3126 = pneg %p3125
      $region38: #{conv3x3_tanh.1} parent=5 // pred_check_branch
        %3128 = sbr.rel (%p3126) target = $region40
      $region39: #{conv3x3_tanh.1} parent=5 // pred_region
        %s3129 = ssub.s32 %s12, 2
        // Predicated region
        $region41: #{conv3x3_tanh.1} parent=39 // pred_check
          %p3130 = pneg %p142
        $region42: #{conv3x3_tanh.1} parent=39 // pred_check_branch
          %3132 = sbr.rel (%p3130) target = $region44
        $region43: #{conv3x3_tanh.1} parent=39 // pred_region
          %s3133 = sand.u32 %s127, 1
          %s3134 = scalar_lea.sflag [#allocation4], %s3133
          %s3135 = sand.u32 %s127, 1
          %s3136 = smul.addr %s3135, 256
          %s3137 = scalar_lea.vmem [#allocation3], %s3136
          %3138 = dma.done %s3134, 4096
        $region44: #{conv3x3_tanh.1} parent=39 // pred_fallthru
          _
      $region40: #{conv3x3_tanh.1} parent=5 // pred_fallthru
        _
    $region6: #{conv3x3_tanh.1} parent=1 // loop_footer
      %s16 = sadd.s32 1, %s12
    $region7: #{conv3x3_tanh.1} parent=1 // loop_footer_branch
      %11 = sbr.rel target = $region3
    $region8: #{conv3x3_tanh.1} parent=1 // loop_exit
      _
    %3139 = vsyncpa [#allocation4], 1
    %s3140 = scalar_lea.sflag [#allocation4], 1
    %3141 = vsyncpa %s3140, 1

</llo_original>
